<compile_context>
chip_gen: v5e
topology: v5e:2x2
jax: 0.10.0
libtpu: 0.0.40
codegen_flags: <defaults>
</compile_context>

<pallas_src>
import functools

import jax
import jax.numpy as jnp
from jax import lax
from jax.experimental import pallas as pl
from jax.experimental.pallas import tpu as pltpu


# ----------------------------------------------------------------------------
# Pallas kernel
# ----------------------------------------------------------------------------
def ffn_kernel(
    lengths_ref,            # scalar-prefetch: [Bp] int32 (SMEM)
    x_ref,                  # [bb, C, Th]  bf16, left halo of `pad` zeros baked in
    w0_ref,                 # [C, ks*C]    conv_0 weight, im2col-flattened, bf16
    w1_ref,                 # [C, ks*C]    conv_1 weight, im2col-flattened, bf16
    vec_ref,                # [C, 4]       columns: b0, b1, gamma, beta (f32)
    o_ref,                  # [bb, C, Tp]  bf16
    col_ref,                # VMEM [ks*C, bb*Tp] bf16 — shared im2col operand
    yh_ref,                 # VMEM [bb, C, 128+Tp+128] bf16 — zero-halo'd y
    res_ref,                # VMEM [C, bb*Tp] bf16 — masked residual
    *,
    kernel_size: int,
    pad: int,
    batch_block: int,
    eps: float,
):
    i = pl.program_id(0)
    bb, C, Th = x_ref.shape
    Tp = o_ref.shape[2]
    ks = kernel_size
    HALO = 128  # aligned halo offset inside yh_ref (stores stay lane-aligned)

    lens = [lengths_ref[i * batch_block + j] for j in range(batch_block)]
    max_len = lens[0]
    for j in range(1, batch_block):
        max_len = jnp.maximum(max_len, lens[j])

    @pl.when(max_len == 0)
    def _():
        # Fully padded batch block (ragged-batch padding): nothing to compute.
        o_ref[...] = jnp.zeros_like(o_ref)

    @pl.when(max_len > 0)
    def _():
        t_halo = lax.broadcasted_iota(jnp.int32, (1, Th), 1)
        t_out = lax.broadcasted_iota(jnp.int32, (1, Tp), 1)

        b0 = vec_ref[:, 0:1]
        b1 = vec_ref[:, 1:2]
        gamma = vec_ref[:, 2:3]
        beta = vec_ref[:, 3:4]

        # ---- im2col for conv_0, built in bf16 straight from the halo'd input.
        for j in range(bb):
            xj = x_ref[j]                                          # [C, Th] bf16
            # wrapper zero-pads the halo / tail, so one condition suffices
            xm = jnp.where(t_halo < pad + lens[j], xj, jnp.zeros_like(xj))
            for k in range(ks):
                col_ref[k * C:(k + 1) * C, j * Tp:(j + 1) * Tp] = xm[:, k:k + Tp]
            # masked residual == center tap; equivalent to the unmasked
            # residual of the reference module under the final output mask.
            res_ref[:, j * Tp:(j + 1) * Tp] = xm[:, pad:pad + Tp]

        # ---- conv_0: ONE wide MXU matmul over N = bb*Tp, bias + ReLU (f32).
        y = jnp.dot(w0_ref[...], col_ref[...],
                    preferred_element_type=jnp.float32)
        y = jnp.maximum(y + b0, 0.0)                               # [C, bb*Tp]
        # dropout = identity (inference)

        # ---- mask conv_0's output, stage it (bf16) in the zero-halo'd,
        #      lane-aligned VMEM scratch, rebuild the im2col for conv_1.
        for j in range(bb):
            yj = y[:, j * Tp:(j + 1) * Tp]
            ym = jnp.where(t_out < lens[j], yj, 0.0).astype(yh_ref.dtype)
            yh_ref[j, :, 0:HALO] = jnp.zeros((C, HALO), yh_ref.dtype)
            yh_ref[j, :, HALO:HALO + Tp] = ym
            yh_ref[j, :, HALO + Tp:HALO + Tp + HALO] = jnp.zeros(
                (C, HALO), yh_ref.dtype)
        for j in range(bb):
            for k in range(ks):
                col_ref[k * C:(k + 1) * C, j * Tp:(j + 1) * Tp] = \
                    yh_ref[j, :, HALO - pad + k:HALO - pad + k + Tp]

        # ---- conv_1: one wide MXU matmul + bias.
        y2 = jnp.dot(w1_ref[...], col_ref[...],
                     preferred_element_type=jnp.float32) + b1
        # dropout = identity (inference)

        # ---- residual + LayerNorm over channels (per time step), fused over
        #      the bb*Tp lane axis, single-pass stats (var = E[z^2] - mean^2).
        z = y2 + res_ref[...].astype(jnp.float32)
        inv_c = 1.0 / C
        mean = jnp.sum(z, axis=0, keepdims=True) * inv_c
        var = jnp.maximum(
            jnp.sum(z * z, axis=0, keepdims=True) * inv_c - mean * mean, 0.0)
        out = (z - mean) * lax.rsqrt(var + eps) * gamma + beta

        # ---- final mask + lane-dense full-block stores (bf16).
        for j in range(bb):
            oj = jnp.where(t_out < lens[j], out[:, j * Tp:(j + 1) * Tp], 0.0)
            o_ref[j] = oj.astype(o_ref.dtype)


# ----------------------------------------------------------------------------
# Wrapper
# ----------------------------------------------------------------------------
def ffn(x, lengths, params, *, kernel_size, batch_block=1, eps=1e-5,
        matmul_dtype=jnp.bfloat16, act_dtype=jnp.bfloat16):
    """x: [B, C, T] float; lengths: [B] int (masks = t < length).

    Returns a bf16 [B, C, T] array (activation I/O is bf16 at the kernel
    boundary; the kernel is HBM-bound, so halving activation bytes matters).
    For v7x keep Bp//batch_block >= 2 so both TensorCores get work.
    """
    assert kernel_size % 2 == 1, "FFN 'same' conv assumes odd kernel_size"
    B, C, T = x.shape
    ks = kernel_size
    pad = (ks - 1) // 2
    bb = max(1, min(batch_block, B))

    # Lane-dense output time axis + input conv halo; batch rounded to block.
    Tp = 128 * pl.cdiv(T, 128)
    halo = 128 * pl.cdiv(2 * pad, 128) if pad > 0 else 0
    Th = Tp + halo
    Bp = bb * pl.cdiv(B, bb)

    xp = jnp.zeros((Bp, C, Th), act_dtype)
    xp = xp.at[:B, :, pad:pad + T].set(x.astype(act_dtype))
    lens = jnp.pad(lengths.astype(jnp.int32), (0, Bp - B))

    # Flatten conv weights (torch layout [C_out, C_in, ks]) for im2col matmul:
    # wflat[:, k*C + i] = w[:, i, k]
    def flat_w(w):
        return jnp.transpose(w, (0, 2, 1)).reshape(C, ks * C).astype(matmul_dtype)

    w0f = flat_w(params["w0"])
    w1f = flat_w(params["w1"])
    vecs = jnp.stack(
        [params["b0"], params["b1"], params["gamma"], params["beta"]],
        axis=1).astype(jnp.float32)                            # [C, 4]

    kernel = functools.partial(
        ffn_kernel, kernel_size=ks, pad=pad, batch_block=bb, eps=eps)

    # VMEM footprint estimate (double-buffered I/O blocks + weights +
    # scratches + f32 temporaries), used to set the scoped-VMEM limit.
    bpe_a = jnp.dtype(act_dtype).itemsize
    bpe_m = jnp.dtype(matmul_dtype).itemsize
    est = (2 * bb * C * Th * bpe_a            # input block (double-buffered)
           + 2 * bb * C * Tp * bpe_a          # output block (double-buffered)
           + 2 * 2 * C * ks * C * bpe_m       # two weights (double-buffered)
           + 2 * C * 4 * 4                    # packed per-channel vectors
           + ks * C * bb * Tp * bpe_m         # col scratch
           + bb * C * (Tp + 256) * bpe_m      # y halo scratch
           + C * bb * Tp * bpe_m              # residual scratch
           + 8 * C * bb * Tp * 4)             # f32 temporaries headroom
    vmem_limit = int(min(max(2 * est, 16 * 1024 * 1024), 48 * 1024 * 1024))

    grid_spec = pltpu.PrefetchScalarGridSpec(
        num_scalar_prefetch=1,
        grid=(Bp // bb,),
        in_specs=[
            pl.BlockSpec((bb, C, Th), lambda i, L: (i, 0, 0)),
            pl.BlockSpec((C, ks * C), lambda i, L: (0, 0)),
            pl.BlockSpec((C, ks * C), lambda i, L: (0, 0)),
            pl.BlockSpec((C, 4), lambda i, L: (0, 0)),
        ],
        out_specs=pl.BlockSpec((bb, C, Tp), lambda i, L: (i, 0, 0)),
        scratch_shapes=[
            pltpu.VMEM((ks * C, bb * Tp), matmul_dtype),       # im2col operand
            pltpu.VMEM((bb, C, Tp + 256), matmul_dtype),       # zero-halo'd y
            pltpu.VMEM((C, bb * Tp), matmul_dtype),            # residual
        ],
    )

    out = pl.pallas_call(
        kernel,
        out_shape=jax.ShapeDtypeStruct((Bp, C, Tp), act_dtype),
        grid_spec=grid_spec,
        compiler_params=pltpu.CompilerParams(
            dimension_semantics=("parallel",),
            vmem_limit_bytes=vmem_limit),
    )(lens, xp, w0f, w1f, vecs)

    return out[:B, :, :T]


# ----------------------------------------------------------------------------
# Pure-JAX reference (for correctness check; same bf16 matmul operands)
# ----------------------------------------------------------------------------
def ffn_ref(x, lengths, p, *, kernel_size, eps=1e-5, matmul_dtype=jnp.bfloat16):
    B, C, T = x.shape
    ks = kernel_size
    pad = (ks - 1) // 2
    mask = (jnp.arange(T)[None, None, :] < lengths[:, None, None]).astype(
        jnp.float32)

    def conv(z, w, b):
        zp = jnp.pad(z, ((0, 0), (0, 0), (pad, pad)))
        out = sum(
            jnp.einsum("oi,bit->bot",
                       w[:, :, k].astype(matmul_dtype),
                       zp[:, :, k:k + T].astype(matmul_dtype),
                       preferred_element_type=jnp.float32)
            for k in range(ks))
        return out + b[None, :, None]

    res = x
    y = conv(x * mask, p["w0"], p["b0"])
    y = jnp.maximum(y, 0.0)
    y = conv(y * mask, p["w1"], p["b1"])
    z = y + res
    m = z.mean(axis=1, keepdims=True)
    v = ((z - m) ** 2).mean(axis=1, keepdims=True)
    out = (z - m) * lax.rsqrt(v + eps) * p["gamma"][None, :, None] \
        + p["beta"][None, :, None]
    return out * mask


# ----------------------------------------------------------------------------
# Main
# ----------------------------------------------------------------------------
if __name__ == "__main__":
    B, C, T = 2, 64, 16
    kernel_size = 5

    key = jax.random.PRNGKey(0)
    k = jax.random.split(key, 6)

    x = jax.random.normal(k[0], (B, C, T), jnp.float32)
    lengths = jnp.array([16, 11], jnp.int32)

    s = (C * kernel_size) ** -0.5
    params = {
        "w0": jax.random.normal(k[1], (C, C, kernel_size), jnp.float32) * s,
        "b0": jax.random.normal(k[2], (C,), jnp.float32) * 0.1,
        "w1": jax.random.normal(k[3], (C, C, kernel_size), jnp.float32) * s,
        "b1": jax.random.normal(k[4], (C,), jnp.float32) * 0.1,
        "gamma": 1.0 + 0.1 * jax.random.normal(k[5], (C,), jnp.float32),
        "beta": jnp.zeros((C,), jnp.float32),
    }

    # Reference on the bf16-rounded input (kernel activation I/O is bf16),
    # with the reference output also rounded through bf16 for a fair compare.
    x_bf = x.astype(jnp.bfloat16).astype(jnp.float32)
    ref = ffn_ref(x_bf, lengths, params, kernel_size=kernel_size)
    ref = ref.astype(jnp.bfloat16).astype(jnp.float32)

    # One batch element per grid step (2 parallel steps -> both v7x cores fed).
    out = ffn(x, lengths, params, kernel_size=kernel_size, batch_block=1)
    out = jax.block_until_ready(out)
    assert out.shape == (B, C, T)
    out32 = out.astype(jnp.float32)
    err = float(jnp.max(jnp.abs(out32 - ref)))
    assert jnp.allclose(out32, ref, atol=2e-2, rtol=2e-2), err

    # Batch-folded path: both batch rows fused into one wide matmul per conv.
    out2 = ffn(x, lengths, params, kernel_size=kernel_size, batch_block=2)
    out2 = jax.block_until_ready(out2)
    out2_32 = out2.astype(jnp.float32)
    err2 = float(jnp.max(jnp.abs(out2_32 - ref)))
    assert jnp.allclose(out2_32, ref, atol=2e-2, rtol=2e-2), err2

    print("KERNEL_OK")
</pallas_src>

<mosaic_0001>
module attributes {stable_mosaic.version = 11 : i64} {
  func.func @ffn_kernel(%arg0: i32, %arg1: memref<2xi32, #tpu.memory_space<smem>>, %arg2: memref<1x64x256xbf16, #tpu.memory_space<vmem>>, %arg3: memref<64x320xbf16, #tpu.memory_space<vmem>>, %arg4: memref<64x320xbf16, #tpu.memory_space<vmem>>, %arg5: memref<64x4xf32, #tpu.memory_space<vmem>>, %arg6: memref<1x64x128xbf16, #tpu.memory_space<vmem>>, %arg7: memref<320x128xbf16, #tpu.memory_space<vmem>>, %arg8: memref<1x64x384xbf16, #tpu.memory_space<vmem>>, %arg9: memref<64x128xbf16, #tpu.memory_space<vmem>>) attributes {dimension_semantics = [#tpu.dimension_semantics<parallel>], iteration_bounds = array<i64: 2>, scalar_prefetch = 1 : i64, scratch_operands = 3 : i64, tpu.core_type = #tpu.core_type<tc>, window_params = [{transform_indices = @transform_0, window_bounds = array<i64: 1, 64, 256>}, {pipeline_mode = #tpu.pipeline_mode<synchronous>, transform_indices = @transform_1, window_bounds = array<i64: 64, 320>}, {pipeline_mode = #tpu.pipeline_mode<synchronous>, transform_indices = @transform_2, window_bounds = array<i64: 64, 320>}, {pipeline_mode = #tpu.pipeline_mode<synchronous>, transform_indices = @transform_3, window_bounds = array<i64: 64, 4>}, {transform_indices = @transform_4, window_bounds = array<i64: 1, 64, 128>}]} {
    %c1_i32 = arith.constant 1 : i32
    %0 = arith.muli %arg0, %c1_i32 : i32
    %c0_i32 = arith.constant 0 : i32
    %1 = arith.addi %0, %c0_i32 : i32
    %2 = arith.index_cast %1 : i32 to index
    %3 = memref.load %arg1[%2] : memref<2xi32, #tpu.memory_space<smem>>
    %c0_i32_0 = arith.constant 0 : i32
    %4 = arith.cmpi eq, %3, %c0_i32_0 : i32
    %5 = arith.extui %4 : i1 to i32
    %c0_i32_1 = arith.constant 0 : i32
    %6 = arith.cmpi ne, %5, %c0_i32_1 : i32
    scf.if %6 {
      %cst = arith.constant 0.000000e+00 : bf16
      %10 = vector.broadcast %cst : bf16 to vector<1x64x128xbf16>
      %c0 = arith.constant 0 : index
      %c0_4 = arith.constant 0 : index
      %c0_5 = arith.constant 0 : index
      %11 = vector.load %arg6[%c0, %c0_4, %c0_5] : memref<1x64x128xbf16, #tpu.memory_space<vmem>>, vector<1x64x128xbf16>
      tpu.vector_store %arg6[%c0, %c0_4, %c0_5], %10 {strides = array<i32>} : memref<1x64x128xbf16, #tpu.memory_space<vmem>>, vector<1x64x128xbf16>,
    } else {
    }
    %c0_i32_2 = arith.constant 0 : i32
    %7 = arith.cmpi sgt, %3, %c0_i32_2 : i32
    %8 = arith.extui %7 : i1 to i32
    %c0_i32_3 = arith.constant 0 : i32
    %9 = arith.cmpi ne, %8, %c0_i32_3 : i32
    scf.if %9 {
      %10 = tpu.iota {dimensions = array<i32: 1>} : vector<1x256xi32>
      %11 = tpu.iota {dimensions = array<i32: 1>} : vector<1x128xi32>
      %c0 = arith.constant 0 : index
      %c0_4 = arith.constant 0 : index
      %12 = vector.load %arg5[%c0, %c0_4] : memref<64x4xf32, #tpu.memory_space<vmem>>, vector<64x1xf32>
      %c0_5 = arith.constant 0 : index
      %c1 = arith.constant 1 : index
      %13 = vector.load %arg5[%c0_5, %c1] : memref<64x4xf32, #tpu.memory_space<vmem>>, vector<64x1xf32>
      %c0_6 = arith.constant 0 : index
      %c2 = arith.constant 2 : index
      %14 = vector.load %arg5[%c0_6, %c2] : memref<64x4xf32, #tpu.memory_space<vmem>>, vector<64x1xf32>
      %c0_7 = arith.constant 0 : index
      %c3 = arith.constant 3 : index
      %15 = vector.load %arg5[%c0_7, %c3] : memref<64x4xf32, #tpu.memory_space<vmem>>, vector<64x1xf32>
      %c0_8 = arith.constant 0 : index
      %c0_9 = arith.constant 0 : index
      %c0_10 = arith.constant 0 : index
      %16 = vector.load %arg2[%c0_8, %c0_9, %c0_10] : memref<1x64x256xbf16, #tpu.memory_space<vmem>>, vector<1x64x256xbf16>
      %17 = vector.shape_cast %16 : vector<1x64x256xbf16> to vector<64x256xbf16>
      %c2_i32 = arith.constant 2 : i32
      %18 = arith.addi %c2_i32, %3 : i32
      %19 = vector.broadcast %18 : i32 to vector<1x256xi32>
      %20 = arith.cmpi slt, %10, %19 : vector<1x256xi32>
      %cst = arith.constant 0.000000e+00 : bf16
      %21 = vector.broadcast %cst : bf16 to vector<64x256xbf16>
      %22 = vector.shape_cast %20 : vector<1x256xi1> to vector<1x256xi1>
      %23 = vector.broadcast %22 : vector<1x256xi1> to vector<64x256xi1>
      %24 = arith.select %23, %17, %21 : vector<64x256xi1>, vector<64x256xbf16>
      %25 = vector.extract_strided_slice %24 {offsets = [0, 0], sizes = [64, 128], strides = [1, 1]} : vector<64x256xbf16> to vector<64x128xbf16>
      %c0_11 = arith.constant 0 : index
      %c0_12 = arith.constant 0 : index
      %26 = vector.load %arg7[%c0_11, %c0_12] : memref<320x128xbf16, #tpu.memory_space<vmem>>, vector<64x128xbf16>
      tpu.vector_store %arg7[%c0_11, %c0_12], %25 {strides = array<i32>} : memref<320x128xbf16, #tpu.memory_space<vmem>>, vector<64x128xbf16>,
      %27 = vector.extract_strided_slice %24 {offsets = [0, 1], sizes = [64, 128], strides = [1, 1]} : vector<64x256xbf16> to vector<64x128xbf16>
      %c64 = arith.constant 64 : index
      %c0_13 = arith.constant 0 : index
      %28 = vector.load %arg7[%c64, %c0_13] : memref<320x128xbf16, #tpu.memory_space<vmem>>, vector<64x128xbf16>
      tpu.vector_store %arg7[%c64, %c0_13], %27 {strides = array<i32>} : memref<320x128xbf16, #tpu.memory_space<vmem>>, vector<64x128xbf16>,
      %29 = vector.extract_strided_slice %24 {offsets = [0, 2], sizes = [64, 128], strides = [1, 1]} : vector<64x256xbf16> to vector<64x128xbf16>
      %c128 = arith.constant 128 : index
      %c0_14 = arith.constant 0 : index
      %30 = vector.load %arg7[%c128, %c0_14] : memref<320x128xbf16, #tpu.memory_space<vmem>>, vector<64x128xbf16>
      tpu.vector_store %arg7[%c128, %c0_14], %29 {strides = array<i32>} : memref<320x128xbf16, #tpu.memory_space<vmem>>, vector<64x128xbf16>,
      %31 = vector.extract_strided_slice %24 {offsets = [0, 3], sizes = [64, 128], strides = [1, 1]} : vector<64x256xbf16> to vector<64x128xbf16>
      %c192 = arith.constant 192 : index
      %c0_15 = arith.constant 0 : index
      %32 = vector.load %arg7[%c192, %c0_15] : memref<320x128xbf16, #tpu.memory_space<vmem>>, vector<64x128xbf16>
      tpu.vector_store %arg7[%c192, %c0_15], %31 {strides = array<i32>} : memref<320x128xbf16, #tpu.memory_space<vmem>>, vector<64x128xbf16>,
      %33 = vector.extract_strided_slice %24 {offsets = [0, 4], sizes = [64, 128], strides = [1, 1]} : vector<64x256xbf16> to vector<64x128xbf16>
      %c256 = arith.constant 256 : index
      %c0_16 = arith.constant 0 : index
      %34 = vector.load %arg7[%c256, %c0_16] : memref<320x128xbf16, #tpu.memory_space<vmem>>, vector<64x128xbf16>
      tpu.vector_store %arg7[%c256, %c0_16], %33 {strides = array<i32>} : memref<320x128xbf16, #tpu.memory_space<vmem>>, vector<64x128xbf16>,
      %35 = vector.extract_strided_slice %24 {offsets = [0, 2], sizes = [64, 128], strides = [1, 1]} : vector<64x256xbf16> to vector<64x128xbf16>
      %c0_17 = arith.constant 0 : index
      %c0_18 = arith.constant 0 : index
      %36 = vector.load %arg9[%c0_17, %c0_18] : memref<64x128xbf16, #tpu.memory_space<vmem>>, vector<64x128xbf16>
      tpu.vector_store %arg9[%c0_17, %c0_18], %35 {strides = array<i32>} : memref<64x128xbf16, #tpu.memory_space<vmem>>, vector<64x128xbf16>,
      %c0_19 = arith.constant 0 : index
      %c0_20 = arith.constant 0 : index
      %37 = vector.load %arg3[%c0_19, %c0_20] : memref<64x320xbf16, #tpu.memory_space<vmem>>, vector<64x320xbf16>
      %c0_21 = arith.constant 0 : index
      %c0_22 = arith.constant 0 : index
      %38 = vector.load %arg7[%c0_21, %c0_22] : memref<320x128xbf16, #tpu.memory_space<vmem>>, vector<320x128xbf16>
      %cst_23 = arith.constant dense<0.000000e+00> : vector<64x128xf32>
      %39 = tpu.matmul %37, %38, %cst_23 {dimension_numbers = #tpu.dot_dimension_numbers<[1], [0], [0], [1], [0, 0, 1, 1], [], []>} : vector<64x320xbf16>, vector<320x128xbf16>, vector<64x128xf32> -> vector<64x128xf32>
      %40 = vector.broadcast %12 : vector<64x1xf32> to vector<64x128xf32>
      %41 = arith.addf %39, %40 : vector<64x128xf32>
      %cst_24 = arith.constant 0.000000e+00 : f32
      %42 = vector.broadcast %cst_24 : f32 to vector<64x128xf32>
      %43 = arith.maximumf %41, %42 : vector<64x128xf32>
      %44 = vector.broadcast %3 : i32 to vector<1x128xi32>
      %45 = arith.cmpi slt, %11, %44 : vector<1x128xi32>
      %cst_25 = arith.constant 0.000000e+00 : f32
      %46 = vector.shape_cast %45 : vector<1x128xi1> to vector<1x128xi1>
      %47 = vector.broadcast %46 : vector<1x128xi1> to vector<64x128xi1>
      %48 = vector.broadcast %cst_25 : f32 to vector<64x128xf32>
      %49 = arith.select %47, %43, %48 : vector<64x128xi1>, vector<64x128xf32>
      %50 = arith.truncf %49 : vector<64x128xf32> to vector<64x128xbf16>
      %cst_26 = arith.constant 0.000000e+00 : bf16
      %51 = vector.broadcast %cst_26 : bf16 to vector<64x128xbf16>
      %c0_27 = arith.constant 0 : index
      %c0_28 = arith.constant 0 : index
      %c0_29 = arith.constant 0 : index
      %52 = vector.load %arg8[%c0_27, %c0_28, %c0_29] : memref<1x64x384xbf16, #tpu.memory_space<vmem>>, vector<1x64x128xbf16>
      %53 = vector.shape_cast %52 : vector<1x64x128xbf16> to vector<64x128xbf16>
      %54 = vector.shape_cast %51 : vector<64x128xbf16> to vector<1x64x128xbf16>
      tpu.vector_store %arg8[%c0_27, %c0_28, %c0_29], %54 {strides = array<i32>} : memref<1x64x384xbf16, #tpu.memory_space<vmem>>, vector<1x64x128xbf16>,
      %c0_30 = arith.constant 0 : index
      %c0_31 = arith.constant 0 : index
      %c128_32 = arith.constant 128 : index
      %55 = vector.load %arg8[%c0_30, %c0_31, %c128_32] : memref<1x64x384xbf16, #tpu.memory_space<vmem>>, vector<1x64x128xbf16>
      %56 = vector.shape_cast %55 : vector<1x64x128xbf16> to vector<64x128xbf16>
      %57 = vector.shape_cast %50 : vector<64x128xbf16> to vector<1x64x128xbf16>
      tpu.vector_store %arg8[%c0_30, %c0_31, %c128_32], %57 {strides = array<i32>} : memref<1x64x384xbf16, #tpu.memory_space<vmem>>, vector<1x64x128xbf16>,
      %cst_33 = arith.constant 0.000000e+00 : bf16
      %58 = vector.broadcast %cst_33 : bf16 to vector<64x128xbf16>
      %c0_34 = arith.constant 0 : index
      %c0_35 = arith.constant 0 : index
      %c256_36 = arith.constant 256 : index
      %59 = vector.load %arg8[%c0_34, %c0_35, %c256_36] : memref<1x64x384xbf16, #tpu.memory_space<vmem>>, vector<1x64x128xbf16>
      %60 = vector.shape_cast %59 : vector<1x64x128xbf16> to vector<64x128xbf16>
      %61 = vector.shape_cast %58 : vector<64x128xbf16> to vector<1x64x128xbf16>
      tpu.vector_store %arg8[%c0_34, %c0_35, %c256_36], %61 {strides = array<i32>} : memref<1x64x384xbf16, #tpu.memory_space<vmem>>, vector<1x64x128xbf16>,
      %c0_37 = arith.constant 0 : index
      %c0_38 = arith.constant 0 : index
      %c126 = arith.constant 126 : index
      %62 = vector.load %arg8[%c0_37, %c0_38, %c126] : memref<1x64x384xbf16, #tpu.memory_space<vmem>>, vector<1x64x128xbf16>
      %63 = vector.shape_cast %62 : vector<1x64x128xbf16> to vector<64x128xbf16>
      %c0_39 = arith.constant 0 : index
      %c0_40 = arith.constant 0 : index
      %64 = vector.load %arg7[%c0_39, %c0_40] : memref<320x128xbf16, #tpu.memory_space<vmem>>, vector<64x128xbf16>
      tpu.vector_store %arg7[%c0_39, %c0_40], %63 {strides = array<i32>} : memref<320x128xbf16, #tpu.memory_space<vmem>>, vector<64x128xbf16>,
      %c0_41 = arith.constant 0 : index
      %c0_42 = arith.constant 0 : index
      %c127 = arith.constant 127 : index
      %65 = vector.load %arg8[%c0_41, %c0_42, %c127] : memref<1x64x384xbf16, #tpu.memory_space<vmem>>, vector<1x64x128xbf16>
      %66 = vector.shape_cast %65 : vector<1x64x128xbf16> to vector<64x128xbf16>
      %c64_43 = arith.constant 64 : index
      %c0_44 = arith.constant 0 : index
      %67 = vector.load %arg7[%c64_43, %c0_44] : memref<320x128xbf16, #tpu.memory_space<vmem>>, vector<64x128xbf16>
      tpu.vector_store %arg7[%c64_43, %c0_44], %66 {strides = array<i32>} : memref<320x128xbf16, #tpu.memory_space<vmem>>, vector<64x128xbf16>,
      %c0_45 = arith.constant 0 : index
      %c0_46 = arith.constant 0 : index
      %c128_47 = arith.constant 128 : index
      %68 = vector.load %arg8[%c0_45, %c0_46, %c128_47] : memref<1x64x384xbf16, #tpu.memory_space<vmem>>, vector<1x64x128xbf16>
      %69 = vector.shape_cast %68 : vector<1x64x128xbf16> to vector<64x128xbf16>
      %c128_48 = arith.constant 128 : index
      %c0_49 = arith.constant 0 : index
      %70 = vector.load %arg7[%c128_48, %c0_49] : memref<320x128xbf16, #tpu.memory_space<vmem>>, vector<64x128xbf16>
      tpu.vector_store %arg7[%c128_48, %c0_49], %69 {strides = array<i32>} : memref<320x128xbf16, #tpu.memory_space<vmem>>, vector<64x128xbf16>,
      %c0_50 = arith.constant 0 : index
      %c0_51 = arith.constant 0 : index
      %c129 = arith.constant 129 : index
      %71 = vector.load %arg8[%c0_50, %c0_51, %c129] : memref<1x64x384xbf16, #tpu.memory_space<vmem>>, vector<1x64x128xbf16>
      %72 = vector.shape_cast %71 : vector<1x64x128xbf16> to vector<64x128xbf16>
      %c192_52 = arith.constant 192 : index
      %c0_53 = arith.constant 0 : index
      %73 = vector.load %arg7[%c192_52, %c0_53] : memref<320x128xbf16, #tpu.memory_space<vmem>>, vector<64x128xbf16>
      tpu.vector_store %arg7[%c192_52, %c0_53], %72 {strides = array<i32>} : memref<320x128xbf16, #tpu.memory_space<vmem>>, vector<64x128xbf16>,
      %c0_54 = arith.constant 0 : index
      %c0_55 = arith.constant 0 : index
      %c130 = arith.constant 130 : index
      %74 = vector.load %arg8[%c0_54, %c0_55, %c130] : memref<1x64x384xbf16, #tpu.memory_space<vmem>>, vector<1x64x128xbf16>
      %75 = vector.shape_cast %74 : vector<1x64x128xbf16> to vector<64x128xbf16>
      %c256_56 = arith.constant 256 : index
      %c0_57 = arith.constant 0 : index
      %76 = vector.load %arg7[%c256_56, %c0_57] : memref<320x128xbf16, #tpu.memory_space<vmem>>, vector<64x128xbf16>
      tpu.vector_store %arg7[%c256_56, %c0_57], %75 {strides = array<i32>} : memref<320x128xbf16, #tpu.memory_space<vmem>>, vector<64x128xbf16>,
      %c0_58 = arith.constant 0 : index
      %c0_59 = arith.constant 0 : index
      %77 = vector.load %arg4[%c0_58, %c0_59] : memref<64x320xbf16, #tpu.memory_space<vmem>>, vector<64x320xbf16>
      %c0_60 = arith.constant 0 : index
      %c0_61 = arith.constant 0 : index
      %78 = vector.load %arg7[%c0_60, %c0_61] : memref<320x128xbf16, #tpu.memory_space<vmem>>, vector<320x128xbf16>
      %cst_62 = arith.constant dense<0.000000e+00> : vector<64x128xf32>
      %79 = tpu.matmul %77, %78, %cst_62 {dimension_numbers = #tpu.dot_dimension_numbers<[1], [0], [0], [1], [0, 0, 1, 1], [], []>} : vector<64x320xbf16>, vector<320x128xbf16>, vector<64x128xf32> -> vector<64x128xf32>
      %80 = vector.broadcast %13 : vector<64x1xf32> to vector<64x128xf32>
      %81 = arith.addf %79, %80 : vector<64x128xf32>
      %c0_63 = arith.constant 0 : index
      %c0_64 = arith.constant 0 : index
      %82 = vector.load %arg9[%c0_63, %c0_64] : memref<64x128xbf16, #tpu.memory_space<vmem>>, vector<64x128xbf16>
      %83 = arith.extf %82 : vector<64x128xbf16> to vector<64x128xf32>
      %84 = arith.addf %81, %83 : vector<64x128xf32>
      %cst_65 = arith.constant dense<0.000000e+00> : vector<128xf32>
      %85 = vector.multi_reduction <add>, %84, %cst_65 [0] : vector<64x128xf32> to vector<128xf32>
      %86 = vector.shape_cast %85 : vector<128xf32> to vector<1x128xf32>
      %cst_66 = arith.constant 1.562500e-02 : f32
      %87 = vector.broadcast %cst_66 : f32 to vector<1x128xf32>
      %88 = arith.mulf %86, %87 : vector<1x128xf32>
      %89 = arith.mulf %84, %84 : vector<64x128xf32>
      %cst_67 = arith.constant dense<0.000000e+00> : vector<128xf32>
      %90 = vector.multi_reduction <add>, %89, %cst_67 [0] : vector<64x128xf32> to vector<128xf32>
      %91 = vector.shape_cast %90 : vector<128xf32> to vector<1x128xf32>
      %cst_68 = arith.constant 1.562500e-02 : f32
      %92 = vector.broadcast %cst_68 : f32 to vector<1x128xf32>
      %93 = arith.mulf %91, %92 : vector<1x128xf32>
      %94 = arith.mulf %88, %88 : vector<1x128xf32>
      %95 = arith.subf %93, %94 : vector<1x128xf32>
      %cst_69 = arith.constant 0.000000e+00 : f32
      %96 = vector.broadcast %cst_69 : f32 to vector<1x128xf32>
      %97 = arith.maximumf %95, %96 : vector<1x128xf32>
      %98 = vector.broadcast %88 : vector<1x128xf32> to vector<64x128xf32>
      %99 = arith.subf %84, %98 : vector<64x128xf32>
      %cst_70 = arith.constant 9.99999974E-6 : f32
      %100 = vector.broadcast %cst_70 : f32 to vector<1x128xf32>
      %101 = arith.addf %97, %100 : vector<1x128xf32>
      %102 = math.rsqrt %101 : vector<1x128xf32>
      %103 = vector.broadcast %102 : vector<1x128xf32> to vector<64x128xf32>
      %104 = arith.mulf %99, %103 : vector<64x128xf32>
      %105 = vector.broadcast %14 : vector<64x1xf32> to vector<64x128xf32>
      %106 = arith.mulf %104, %105 : vector<64x128xf32>
      %107 = vector.broadcast %15 : vector<64x1xf32> to vector<64x128xf32>
      %108 = arith.addf %106, %107 : vector<64x128xf32>
      %109 = vector.broadcast %3 : i32 to vector<1x128xi32>
      %110 = arith.cmpi slt, %11, %109 : vector<1x128xi32>
      %cst_71 = arith.constant 0.000000e+00 : f32
      %111 = vector.shape_cast %110 : vector<1x128xi1> to vector<1x128xi1>
      %112 = vector.broadcast %111 : vector<1x128xi1> to vector<64x128xi1>
      %113 = vector.broadcast %cst_71 : f32 to vector<64x128xf32>
      %114 = arith.select %112, %108, %113 : vector<64x128xi1>, vector<64x128xf32>
      %115 = arith.truncf %114 : vector<64x128xf32> to vector<64x128xbf16>
      %c0_72 = arith.constant 0 : index
      %c0_73 = arith.constant 0 : index
      %c0_74 = arith.constant 0 : index
      %116 = vector.load %arg6[%c0_72, %c0_73, %c0_74] : memref<1x64x128xbf16, #tpu.memory_space<vmem>>, vector<1x64x128xbf16>
      %117 = vector.shape_cast %116 : vector<1x64x128xbf16> to vector<64x128xbf16>
      %118 = vector.shape_cast %115 : vector<64x128xbf16> to vector<1x64x128xbf16>
      tpu.vector_store %arg6[%c0_72, %c0_73, %c0_74], %118 {strides = array<i32>} : memref<1x64x128xbf16, #tpu.memory_space<vmem>>, vector<1x64x128xbf16>,
    } else {
    }
    return
  }
  func.func @transform_0(%arg0: i32, %arg1: memref<2xi32, #tpu.memory_space<smem>>) -> (i32, i32, i32) {
    %c0_i32 = arith.constant 0 : i32
    %c0_i32_0 = arith.constant 0 : i32
    %c0_i32_1 = arith.constant 0 : i32
    return %arg0, %c0_i32, %c0_i32_0 : i32, i32, i32
  }
  func.func @transform_1(%arg0: i32, %arg1: memref<2xi32, #tpu.memory_space<smem>>) -> (i32, i32) {
    %c0_i32 = arith.constant 0 : i32
    %c0_i32_0 = arith.constant 0 : i32
    %c0_i32_1 = arith.constant 0 : i32
    return %c0_i32, %c0_i32_0 : i32, i32
  }
  func.func @transform_2(%arg0: i32, %arg1: memref<2xi32, #tpu.memory_space<smem>>) -> (i32, i32) {
    %c0_i32 = arith.constant 0 : i32
    %c0_i32_0 = arith.constant 0 : i32
    %c0_i32_1 = arith.constant 0 : i32
    return %c0_i32, %c0_i32_0 : i32, i32
  }
  func.func @transform_3(%arg0: i32, %arg1: memref<2xi32, #tpu.memory_space<smem>>) -> (i32, i32) {
    %c0_i32 = arith.constant 0 : i32
    %c0_i32_0 = arith.constant 0 : i32
    %c0_i32_1 = arith.constant 0 : i32
    return %c0_i32, %c0_i32_0 : i32, i32
  }
  func.func @transform_4(%arg0: i32, %arg1: memref<2xi32, #tpu.memory_space<smem>>) -> (i32, i32, i32) {
    %c0_i32 = arith.constant 0 : i32
    %c0_i32_0 = arith.constant 0 : i32
    %c0_i32_1 = arith.constant 0 : i32
    return %arg0, %c0_i32, %c0_i32_0 : i32, i32, i32
  }
}

</mosaic_0001>

<llo_original>
// kernel: tpu_custom_call.1
$region0: #{tpu_custom_call.1}
  #allocation0 [shape = 'u32[]', space=smem, size = 0x4, offset = 0x4, fixed_abs, tag = 'smem constant byte address 0x4 - core index']
  #allocation1 [shape = 'u32[72,128]{1,0:T(1,128)}', space=vmem, size = 0x9000, scoped, tag = 'internal scratch']
  #allocation2 [shape = 'bf16[320,128]{1,0:T(8,128)(2,1)}', space=vmem, size = 0x14000, scoped, tag = 'scratch operand']
  #allocation3 [shape = 'bf16[1,64,384]{2,1,0:T(8,128)(2,1)}', space=vmem, size = 0xc000, scoped, tag = 'scratch operand']
  #allocation4 [shape = 'bf16[64,128]{1,0:T(8,128)(2,1)}', space=vmem, size = 0x4000, scoped, tag = 'scratch operand']
  #allocation5 [shape = 's32[1]{0}', space=sflag, size = 0x4, scoped, tag = 'scoped memory for tpu_custom_call.1']
  #allocation6 [shape = 'u8[512]{0}', space=smem, size = 0x200, scoped, tag = 'prefetched SMEM operand 0']
  %s0 = inlined_call_operand.vmem [shape: s32[2], index: 0, kind: input, shape index: {}]
  %s1 = inlined_call_operand.hbm [shape: bf16[2,64,256], index: 1, kind: input, shape index: {}]
  %s2 = inlined_call_operand.hbm [shape: bf16[64,320], index: 2, kind: input, shape index: {}]
  %s3 = inlined_call_operand.hbm [shape: bf16[64,320], index: 3, kind: input, shape index: {}]
  %s4 = inlined_call_operand.vmem [shape: f32[64,4], index: 4, kind: input, shape index: {}]
  %s5 = inlined_call_operand.hbm [shape: bf16[2,64,128], index: 5, kind: output, shape index: {}]
  %s6 = sld [smem:[#allocation0]]
  $region69: #{tpu_custom_call.1} parent=0
    _
  %s8 = ssub.s32 1, %s6
  %s9 = scalar_select 0, %s8, %s6
  %s11 = sshll.u32 %s0, 4
  %s12 = int_to_ptr.vmem [resolvable:$true] %s11
  %14 = dma.vmem_to_smem %s12, 16, [#allocation6], [#allocation5]
  %16 = dma.done [#allocation5], 16
  %17 = sfence
  $region1: #{tpu_custom_call.1} parent=0
    #allocation7 [shape = 'u8[65536]{0}', space=vmem, size = 0x10000, scoped, tag = 'input window, operand 1']
    #allocation8 [shape = 's32[2]{0}', space=sflag, size = 0x8, scoped, tag = 'scoped memory for tpu_custom_call.1']
    #allocation9 [shape = 's32[2]{0}', space=sflag, size = 0x8, scoped, tag = 'scoped memory for tpu_custom_call.1']
    #allocation10 [shape = 'u8[49152]{0}', space=vmem, size = 0xc000, scoped, tag = 'input window, operand 2, single buffered']
    #allocation11 [shape = 's32[1]{0}', space=sflag, size = 0x4, scoped, tag = 'scoped memory for tpu_custom_call.1']
    #allocation12 [shape = 'u8[49152]{0}', space=vmem, size = 0xc000, scoped, tag = 'input window, operand 3, single buffered']
    #allocation13 [shape = 'u8[32768]{0}', space=vmem, size = 0x8000, scoped, tag = 'output window, operand 0']
    %18 = vsyncpa [#allocation8], 0
    %s19 = scalar_lea.sflag [#allocation8], 1
    %20 = vsyncpa %s19, 0
    %21 = vsyncpa [#allocation11], 0
    %22 = vsyncpa [#allocation9], 0
    %s23 = scalar_lea.sflag [#allocation9], 1
    %24 = vsyncpa %s23, 0
    loop: start=0, step=1, limit=4
    $region2: #{tpu_custom_call.1} parent=1 // loop_pre_header
      _
    $region3: #{tpu_custom_call.1} parent=1 // loop_header
      %s26 = sphi 0, %s30
      %p27 = scmp.ge.s32.totalorder %s26, 4
      %s36 = sphi 0, %s38
      %s39 = sphi 0, %s36
      %s40 = sphi 0, %s39
      %s56 = sphi 0, %s40
      %s60 = sphi 0, %s60
      %s62 = sphi 0, %s60
      %s63 = sphi 0, %s62
      %s77 = sphi 0, %s63
      %s81 = sphi 0, %s81
      %s83 = sphi 0, %s81
      %s84 = sphi 0, %s83
      %s98 = sphi 0, %s84
      %s102 = sphi 0, %s102
      %s104 = sphi 0, %s102
      %s105 = sphi 0, %s104
      %s119 = sphi 0, %s105
      %s125 = sphi 0, %s127
      %s128 = sphi 0, %s125
      %s129 = sphi 0, %s128
      %s145 = sphi 0, %s129
    $region4: #{tpu_custom_call.1} parent=1 // loop_header_branch
      %29 = sbr.rel (%p27) target = $region8
    $region5: #{tpu_custom_call.1} parent=1 // loop_body
      %s31 = ssub.s32 %s26, 1
      %s32 = ssub.s32 %s26, 2
      %s33 = sadd.s32 %s26, 1
      %s34 = ssub.s32 %s26, %s33
      %p35 = scmp.eq.s32.totalorder %s34, 0
      %s37 = sadd.s32 %s36, 1
      %s38 = scalar_select %p35, %s36, %s37
      %p41 = pneg %p35
      %p42 = scmp.eq.s32.totalorder %s26, 1
      %p43 = por %p41, %p42
      %p44 = scmp.ne.s32.totalorder %s36, %s39
      %p45 = scmp.eq.s32.totalorder %s26, 0
      %p46 = por %p44, %p45
      %p47 = scmp.ne.s32.totalorder %s36, %s39
      %p48 = scmp.eq.s32.totalorder %s31, 1
      %p49 = por %p47, %p48
      %p50 = scmp.ne.s32.totalorder %s39, %s40
      %p51 = scmp.eq.s32.totalorder %s31, 0
      %p52 = por %p50, %p51
      %p53 = scmp.ne.s32.totalorder %s39, %s40
      %p54 = scmp.eq.s32.totalorder %s32, 1
      %p55 = por %p53, %p54
      %p57 = scmp.ne.s32.totalorder %s40, %s56
      %p58 = scmp.eq.s32.totalorder %s32, 0
      %p59 = por %p57, %p58
      %s61 = sadd.s32 %s60, 1
      %p64 = scmp.eq.s32.totalorder %s26, 1
      %p65 = scmp.ne.s32.totalorder %s60, %s62
      %p66 = scmp.eq.s32.totalorder %s26, 0
      %p67 = por %p65, %p66
      %p68 = scmp.ne.s32.totalorder %s60, %s62
      %p69 = scmp.eq.s32.totalorder %s31, 1
      %p70 = por %p68, %p69
      %p71 = scmp.ne.s32.totalorder %s62, %s63
      %p72 = scmp.eq.s32.totalorder %s31, 0
      %p73 = por %p71, %p72
      %p74 = scmp.ne.s32.totalorder %s62, %s63
      %p75 = scmp.eq.s32.totalorder %s32, 1
      %p76 = por %p74, %p75
      %p78 = scmp.ne.s32.totalorder %s63, %s77
      %p79 = scmp.eq.s32.totalorder %s32, 0
      %p80 = por %p78, %p79
      %s82 = sadd.s32 %s81, 1
      %p85 = scmp.eq.s32.totalorder %s26, 1
      %p86 = scmp.ne.s32.totalorder %s81, %s83
      %p87 = scmp.eq.s32.totalorder %s26, 0
      %p88 = por %p86, %p87
      %p89 = scmp.ne.s32.totalorder %s81, %s83
      %p90 = scmp.eq.s32.totalorder %s31, 1
      %p91 = por %p89, %p90
      %p92 = scmp.ne.s32.totalorder %s83, %s84
      %p93 = scmp.eq.s32.totalorder %s31, 0
      %p94 = por %p92, %p93
      %p95 = scmp.ne.s32.totalorder %s83, %s84
      %p96 = scmp.eq.s32.totalorder %s32, 1
      %p97 = por %p95, %p96
      %p99 = scmp.ne.s32.totalorder %s84, %s98
      %p100 = scmp.eq.s32.totalorder %s32, 0
      %p101 = por %p99, %p100
      %s103 = sadd.s32 %s102, 1
      %p106 = scmp.eq.s32.totalorder %s26, 1
      %p107 = scmp.ne.s32.totalorder %s102, %s104
      %p108 = scmp.eq.s32.totalorder %s26, 0
      %p109 = por %p107, %p108
      %p110 = scmp.ne.s32.totalorder %s102, %s104
      %p111 = scmp.eq.s32.totalorder %s31, 1
      %p112 = por %p110, %p111
      %p113 = scmp.ne.s32.totalorder %s104, %s105
      %p114 = scmp.eq.s32.totalorder %s31, 0
      %p115 = por %p113, %p114
      %p116 = scmp.ne.s32.totalorder %s104, %s105
      %p117 = scmp.eq.s32.totalorder %s32, 1
      %p118 = por %p116, %p117
      %p120 = scmp.ne.s32.totalorder %s105, %s119
      %p121 = scmp.eq.s32.totalorder %s32, 0
      %p122 = por %p120, %p121
      %s123 = ssub.s32 %s26, %s33
      %p124 = scmp.eq.s32.totalorder %s123, 0
      %s126 = sadd.s32 %s125, 1
      %s127 = scalar_select %p124, %s125, %s126
      %p130 = pneg %p124
      %p131 = scmp.eq.s32.totalorder %s26, 1
      %p132 = por %p130, %p131
      %p133 = scmp.ne.s32.totalorder %s125, %s128
      %p134 = scmp.eq.s32.totalorder %s26, 0
      %p135 = por %p133, %p134
      %p136 = scmp.ne.s32.totalorder %s125, %s128
      %p137 = scmp.eq.s32.totalorder %s31, 1
      %p138 = por %p136, %p137
      %p139 = scmp.ne.s32.totalorder %s128, %s129
      %p140 = scmp.eq.s32.totalorder %s31, 0
      %p141 = por %p139, %p140
      %p142 = scmp.ne.s32.totalorder %s128, %s129
      %p143 = scmp.eq.s32.totalorder %s32, 1
      %p144 = por %p142, %p143
      %p146 = scmp.ne.s32.totalorder %s129, %s145
      %p147 = scmp.eq.s32.totalorder %s32, 0
      %p148 = por %p146, %p147
      %p149 = scmp.le.s32.totalorder 1, %s26
      %p150 = scmp.lt.s32.totalorder %s26, 3
      %p151 = pnand %p149, %p150
      %p152 = pneg %p151
      // Predicated region
      $region9: #{tpu_custom_call.1} parent=5 // pred_check
        _
      $region10: #{tpu_custom_call.1} parent=5 // pred_check_branch
        %154 = sbr.rel (%p151) target = $region12
      $region11: #{tpu_custom_call.1} parent=5 // pred_region
        %s155 = ssub.s32 %s26, 1
        // Predicated region
        $region13: #{tpu_custom_call.1} parent=11 // pred_check
          %p156 = pneg %p73
        $region14: #{tpu_custom_call.1} parent=11 // pred_check_branch
          %158 = sbr.rel (%p156) target = $region16
        $region15: #{tpu_custom_call.1} parent=11 // pred_region
          %160 = vsyncadd [#allocation11], 0
          %s161 = sshll.u32 %s2, 4
          %s162 = int_to_ptr.hbm [resolvable:$true] %s161
          %s163 = sshll.u32 [#allocation10], 4
          %s164 = int_to_ptr.vmem [resolvable:$true] %s163
          %169 = dma.hbm_to_vmem [thread:$0]  %s162, 1536, %s164, [#allocation11], 192, 192, 12
        $region16: #{tpu_custom_call.1} parent=11 // pred_fallthru
          _
        // Predicated region
        $region17: #{tpu_custom_call.1} parent=11 // pred_check
          %p170 = pneg %p94
        $region18: #{tpu_custom_call.1} parent=11 // pred_check_branch
          %172 = sbr.rel (%p170) target = $region20
        $region19: #{tpu_custom_call.1} parent=11 // pred_region
          %174 = vsyncadd [#allocation11], 0
          %s175 = sshll.u32 %s3, 4
          %s176 = int_to_ptr.hbm [resolvable:$true] %s175
          %s177 = sshll.u32 [#allocation12], 4
          %s178 = int_to_ptr.vmem [resolvable:$true] %s177
          %183 = dma.hbm_to_vmem [thread:$0]  %s176, 1536, %s178, [#allocation11], 192, 192, 12
        $region20: #{tpu_custom_call.1} parent=11 // pred_fallthru
          _
        // Predicated region
        $region21: #{tpu_custom_call.1} parent=11 // pred_check
          %p184 = pneg %p115
        $region22: #{tpu_custom_call.1} parent=11 // pred_check_branch
          %186 = sbr.rel (%p184) target = $region24
        $region23: #{tpu_custom_call.1} parent=11 // pred_region
          _
        $region24: #{tpu_custom_call.1} parent=11 // pred_fallthru
          _
      $region12: #{tpu_custom_call.1} parent=5 // pred_fallthru
        _
      %p187 = scmp.lt.s32.totalorder %s26, 2
      // Predicated region
      $region25: #{tpu_custom_call.1} parent=5 // pred_check
        %p188 = pneg %p187
      $region26: #{tpu_custom_call.1} parent=5 // pred_check_branch
        %190 = sbr.rel (%p188) target = $region28
      $region27: #{tpu_custom_call.1} parent=5 // pred_region
        // Predicated region
        $region29: #{tpu_custom_call.1} parent=27 // pred_check
          %p191 = pneg %p46
        $region30: #{tpu_custom_call.1} parent=27 // pred_check_branch
          %193 = sbr.rel (%p191) target = $region32
        $region31: #{tpu_custom_call.1} parent=27 // pred_region
          %s194 = sand.u32 %s36, 1
          %s195 = scalar_lea.sflag [#allocation8], %s194
          %s196 = sand.u32 %s36, 1
          %s197 = smul.addr %s196, 64
          %s198 = scalar_lea.vmem [#allocation7], %s197
          %200 = vsyncadd %s195, 0
          %s201 = smul.addr %s26, 16
          %s202 = smul.addr %s201, 4
          %s203 = scalar_lea.hbm %s1, %s202
          %s204 = sshll.u32 %s203, 4
          %s205 = int_to_ptr.hbm [resolvable:$true] %s204
          %s206 = sshll.u32 %s198, 4
          %s207 = int_to_ptr.vmem [resolvable:$true] %s206
          %212 = dma.hbm_to_vmem [thread:$0]  %s205, 1024, %s207, %s195, 128, 128, 8
        $region32: #{tpu_custom_call.1} parent=27 // pred_fallthru
          _
      $region28: #{tpu_custom_call.1} parent=5 // pred_fallthru
        _
      %p213 = scmp.le.s32.totalorder 1, %s26
      %p214 = scmp.lt.s32.totalorder %s26, 3
      %p215 = pnand %p213, %p214
      %p216 = pneg %p215
      // Predicated region
      $region33: #{tpu_custom_call.1} parent=5 // pred_check
        _
      $region34: #{tpu_custom_call.1} parent=5 // pred_check_branch
        %218 = sbr.rel (%p215) target = $region36
      $region35: #{tpu_custom_call.1} parent=5 // pred_region
        %s219 = ssub.s32 %s26, 1
        %s220 = sand.u32 %s39, 1
        %s221 = scalar_lea.sflag [#allocation8], %s220
        %s222 = sand.u32 %s39, 1
        %s223 = smul.addr %s222, 64
        %s224 = scalar_lea.vmem [#allocation7], %s223
        // Predicated region
        $region37: #{tpu_custom_call.1} parent=35 // pred_check
          %p225 = pneg %p52
        $region38: #{tpu_custom_call.1} parent=35 // pred_check_branch
          %227 = sbr.rel (%p225) target = $region40
        $region39: #{tpu_custom_call.1} parent=35 // pred_region
          %229 = dma.done %s221, 1024
        $region40: #{tpu_custom_call.1} parent=35 // pred_fallthru
          _
        // Predicated region
        $region41: #{tpu_custom_call.1} parent=35 // pred_check
          %p230 = pneg %p73
        $region42: #{tpu_custom_call.1} parent=35 // pred_check_branch
          %232 = sbr.rel (%p230) target = $region44
        $region43: #{tpu_custom_call.1} parent=35 // pred_region
          %234 = dma.done [#allocation11], 1536
        $region44: #{tpu_custom_call.1} parent=35 // pred_fallthru
          _
        // Predicated region
        $region45: #{tpu_custom_call.1} parent=35 // pred_check
          %p235 = pneg %p94
        $region46: #{tpu_custom_call.1} parent=35 // pred_check_branch
          %237 = sbr.rel (%p235) target = $region48
        $region47: #{tpu_custom_call.1} parent=35 // pred_region
          %239 = dma.done [#allocation11], 1536
        $region48: #{tpu_custom_call.1} parent=35 // pred_fallthru
          _
        %s240 = sand.u32 %s39, 1
        %s241 = scalar_lea.sflag [#allocation8], %s240
        %s242 = sand.u32 %s39, 1
        %s243 = smul.addr %s242, 64
        %s244 = scalar_lea.vmem [#allocation7], %s243
        %p245 = pneg %p52
        %p246 = pneg %p49
        %p247 = pneg %p73
        %p248 = pneg %p70
        %p249 = pneg %p94
        %p250 = pneg %p91
        %p251 = pneg %p115
        %p252 = pneg %p112
        %p253 = pneg %p141
        %p254 = pneg %p138
        %s255 = sand.u32 %s128, 1
        %s256 = scalar_lea.sflag [#allocation9], %s255
        %s257 = sand.u32 %s128, 1
        %s258 = smul.addr %s257, 32
        %s259 = scalar_lea.vmem [#allocation13], %s258
        %s261 = sld [smem:[#allocation6 + %s31]]
        %p262 = scmp.eq.s32.totalorder %s261, 0
        // Predicated region
        $region49: #{tpu_custom_call.1} parent=35 // pred_check
          %p263 = pneg %p262
        $region50: #{tpu_custom_call.1} parent=35 // pred_check_branch
          %265 = sbr.rel (%p263) target = $region52
        $region51: #{tpu_custom_call.1} parent=35 // pred_region
          %266 = vst [vmem:[%s259] sm:$0xf] 0
          %267 = vst [vmem:[%s259 + $0x4] sm:$0xf] 0
          %268 = vst [vmem:[%s259 + $0x8] sm:$0xf] 0
          %269 = vst [vmem:[%s259 + $0xc] sm:$0xf] 0
          %270 = vst [vmem:[%s259 + $0x10] sm:$0xf] 0
          %271 = vst [vmem:[%s259 + $0x14] sm:$0xf] 0
          %272 = vst [vmem:[%s259 + $0x18] sm:$0xf] 0
          %273 = vst [vmem:[%s259 + $0x1c] sm:$0xf] 0
        $region52: #{tpu_custom_call.1} parent=35 // pred_fallthru
          _
        %p274 = scmp.gt.s32.totalorder %s261, 0
        // Predicated region
        $region53: #{tpu_custom_call.1} parent=35 // pred_check
          %p275 = pneg %p274
        $region54: #{tpu_custom_call.1} parent=35 // pred_check_branch
          %277 = sbr.rel (%p275) target = $region56
        $region55: #{tpu_custom_call.1} parent=35 // pred_region
          %v278 = vlaneseq
          %v279 = vand.u32 %v278, 127
          %v280 = vadd.s32 %v279, 128
          %v281 = vld [vmem:[%s4] sm:$0xff]
          %v282 = vld [vmem:[%s4 + $0x8] sm:$0xff]
          %v283 = vld [vmem:[%s4 + $0x10] sm:$0xff]
          %v284 = vld [vmem:[%s4 + $0x18] sm:$0xff]
          %v285 = vld [vmem:[%s4 + $0x20] sm:$0xff]
          %v286 = vld [vmem:[%s4 + $0x28] sm:$0xff]
          %v287 = vld [vmem:[%s4 + $0x30] sm:$0xff]
          %v288 = vld [vmem:[%s4 + $0x38] sm:$0xff]
          %v289 = vld [vmem:[%s224] sm:$0xff]
          %v290 = vld [vmem:[%s224 + $0x8] sm:$0xff]
          %v291 = vld [vmem:[%s224 + $0x10] sm:$0xff]
          %v292 = vld [vmem:[%s224 + $0x18] sm:$0xff]
          %v293 = vld [vmem:[%s224 + $0x20] sm:$0xff]
          %v294 = vld [vmem:[%s224 + $0x28] sm:$0xff]
          %v295 = vld [vmem:[%s224 + $0x30] sm:$0xff]
          %v296 = vld [vmem:[%s224 + $0x38] sm:$0xff]
          %s297 = sadd.s32 %s261, 2
          %v298 = vstv %s297
          %vm299 = vcmp.lt.s32.totalorder %v279, %v298
          %vm300 = vcmp.lt.s32.totalorder %v280, %v298
          %v301 = vsel %vm299, 1, 0
          %v302 = vsel %vm300, 1, 0
          %vm303 = vcmp.eq.s32.totalorder %v301, 1
          %vm304 = vcmp.eq.s32.totalorder %v302, 1
          %vm305 = vmpackc.low %vm304, %vm303
          %v306 = vsel %vm305, %v289, 0
          %v307 = vsel %vm305, %v290, 0
          %v308 = vsel %vm305, %v291, 0
          %v309 = vsel %vm305, %v292, 0
          %v310 = vsel %vm305, %v293, 0
          %v311 = vsel %vm305, %v294, 0
          %v312 = vsel %vm305, %v295, 0
          %v313 = vsel %vm305, %v296, 0
          %314 = vst [vmem:[#allocation2] sm:$0xf] %v306
          %315 = vst [vmem:[#allocation2 + $0x4] sm:$0xf] %v307
          %316 = vst [vmem:[#allocation2 + $0x8] sm:$0xf] %v308
          %317 = vst [vmem:[#allocation2 + $0xc] sm:$0xf] %v309
          %318 = vst [vmem:[#allocation2 + $0x10] sm:$0xf] %v310
          %319 = vst [vmem:[#allocation2 + $0x14] sm:$0xf] %v311
          %320 = vst [vmem:[#allocation2 + $0x18] sm:$0xf] %v312
          %321 = vst [vmem:[#allocation2 + $0x1c] sm:$0xf] %v313
          %330 = vrot.lane.b32.xlu0 %v306, 127
          %v331 = vpop.permute.xlu0 %330
          %332 = vrot.lane.b32.xlu0 %v307, 127
          %v333 = vpop.permute.xlu0 %332
          %334 = vrot.lane.b32.xlu0 %v308, 127
          %v335 = vpop.permute.xlu0 %334
          %336 = vrot.lane.b32.xlu0 %v309, 127
          %v337 = vpop.permute.xlu0 %336
          %338 = vrot.lane.b32.xlu0 %v310, 127
          %v339 = vpop.permute.xlu0 %338
          %340 = vrot.lane.b32.xlu0 %v311, 127
          %v341 = vpop.permute.xlu0 %340
          %342 = vrot.lane.b32.xlu0 %v312, 127
          %v343 = vpop.permute.xlu0 %342
          %344 = vrot.lane.b32.xlu0 %v313, 127
          %v345 = vpop.permute.xlu0 %344
          %v346 = vrot.slane %v331, 4
          %v347 = vrot.slane %v333, 4
          %v348 = vrot.slane %v335, 4
          %v349 = vrot.slane %v337, 4
          %v350 = vrot.slane %v339, 4
          %v351 = vrot.slane %v341, 4
          %v352 = vrot.slane %v343, 4
          %v353 = vrot.slane %v345, 4
          %vm354 = vcmask 1039360
          %v355 = vsel %vm354, %v331, %v346
          %v356 = vsel %vm354, %v333, %v347
          %v357 = vsel %vm354, %v335, %v348
          %v358 = vsel %vm354, %v337, %v349
          %v359 = vsel %vm354, %v339, %v350
          %v360 = vsel %vm354, %v341, %v351
          %v361 = vsel %vm354, %v343, %v352
          %v362 = vsel %vm354, %v345, %v353
          %371 = vst [vmem:[#allocation2 + $0x20] sm:$0xf] %v355
          %372 = vst [vmem:[#allocation2 + $0x24] sm:$0xf] %v356
          %373 = vst [vmem:[#allocation2 + $0x28] sm:$0xf] %v357
          %374 = vst [vmem:[#allocation2 + $0x2c] sm:$0xf] %v358
          %375 = vst [vmem:[#allocation2 + $0x30] sm:$0xf] %v359
          %376 = vst [vmem:[#allocation2 + $0x34] sm:$0xf] %v360
          %377 = vst [vmem:[#allocation2 + $0x38] sm:$0xf] %v361
          %378 = vst [vmem:[#allocation2 + $0x3c] sm:$0xf] %v362
          %379 = vrot.lane.b32.xlu0 %v306, 126
          %v380 = vpop.permute.xlu0 %379
          %381 = vrot.lane.b32.xlu0 %v307, 126
          %v382 = vpop.permute.xlu0 %381
          %383 = vrot.lane.b32.xlu0 %v308, 126
          %v384 = vpop.permute.xlu0 %383
          %385 = vrot.lane.b32.xlu0 %v309, 126
          %v386 = vpop.permute.xlu0 %385
          %387 = vrot.lane.b32.xlu0 %v310, 126
          %v388 = vpop.permute.xlu0 %387
          %389 = vrot.lane.b32.xlu0 %v311, 126
          %v390 = vpop.permute.xlu0 %389
          %391 = vrot.lane.b32.xlu0 %v312, 126
          %v392 = vpop.permute.xlu0 %391
          %393 = vrot.lane.b32.xlu0 %v313, 126
          %v394 = vpop.permute.xlu0 %393
          %v395 = vrot.slane %v380, 4
          %v396 = vrot.slane %v382, 4
          %v397 = vrot.slane %v384, 4
          %v398 = vrot.slane %v386, 4
          %v399 = vrot.slane %v388, 4
          %v400 = vrot.slane %v390, 4
          %v401 = vrot.slane %v392, 4
          %v402 = vrot.slane %v394, 4
          %vm403 = vcmask 1031168
          %v404 = vsel %vm403, %v380, %v395
          %v405 = vsel %vm403, %v382, %v396
          %v406 = vsel %vm403, %v384, %v397
          %v407 = vsel %vm403, %v386, %v398
          %v408 = vsel %vm403, %v388, %v399
          %v409 = vsel %vm403, %v390, %v400
          %v410 = vsel %vm403, %v392, %v401
          %v411 = vsel %vm403, %v394, %v402
          %420 = vst [vmem:[#allocation2 + $0x40] sm:$0xf] %v404
          %421 = vst [vmem:[#allocation2 + $0x44] sm:$0xf] %v405
          %422 = vst [vmem:[#allocation2 + $0x48] sm:$0xf] %v406
          %423 = vst [vmem:[#allocation2 + $0x4c] sm:$0xf] %v407
          %424 = vst [vmem:[#allocation2 + $0x50] sm:$0xf] %v408
          %425 = vst [vmem:[#allocation2 + $0x54] sm:$0xf] %v409
          %426 = vst [vmem:[#allocation2 + $0x58] sm:$0xf] %v410
          %427 = vst [vmem:[#allocation2 + $0x5c] sm:$0xf] %v411
          %428 = vrot.lane.b32.xlu0 %v306, 125
          %v429 = vpop.permute.xlu0 %428
          %430 = vrot.lane.b32.xlu0 %v307, 125
          %v431 = vpop.permute.xlu0 %430
          %432 = vrot.lane.b32.xlu0 %v308, 125
          %v433 = vpop.permute.xlu0 %432
          %434 = vrot.lane.b32.xlu0 %v309, 125
          %v435 = vpop.permute.xlu0 %434
          %436 = vrot.lane.b32.xlu0 %v310, 125
          %v437 = vpop.permute.xlu0 %436
          %438 = vrot.lane.b32.xlu0 %v311, 125
          %v439 = vpop.permute.xlu0 %438
          %440 = vrot.lane.b32.xlu0 %v312, 125
          %v441 = vpop.permute.xlu0 %440
          %442 = vrot.lane.b32.xlu0 %v313, 125
          %v443 = vpop.permute.xlu0 %442
          %v444 = vrot.slane %v429, 4
          %v445 = vrot.slane %v431, 4
          %v446 = vrot.slane %v433, 4
          %v447 = vrot.slane %v435, 4
          %v448 = vrot.slane %v437, 4
          %v449 = vrot.slane %v439, 4
          %v450 = vrot.slane %v441, 4
          %v451 = vrot.slane %v443, 4
          %vm452 = vcmask 1022976
          %v453 = vsel %vm452, %v429, %v444
          %v454 = vsel %vm452, %v431, %v445
          %v455 = vsel %vm452, %v433, %v446
          %v456 = vsel %vm452, %v435, %v447
          %v457 = vsel %vm452, %v437, %v448
          %v458 = vsel %vm452, %v439, %v449
          %v459 = vsel %vm452, %v441, %v450
          %v460 = vsel %vm452, %v443, %v451
          %469 = vst [vmem:[#allocation2 + $0x60] sm:$0xf] %v453
          %470 = vst [vmem:[#allocation2 + $0x64] sm:$0xf] %v454
          %471 = vst [vmem:[#allocation2 + $0x68] sm:$0xf] %v455
          %472 = vst [vmem:[#allocation2 + $0x6c] sm:$0xf] %v456
          %473 = vst [vmem:[#allocation2 + $0x70] sm:$0xf] %v457
          %474 = vst [vmem:[#allocation2 + $0x74] sm:$0xf] %v458
          %475 = vst [vmem:[#allocation2 + $0x78] sm:$0xf] %v459
          %476 = vst [vmem:[#allocation2 + $0x7c] sm:$0xf] %v460
          %477 = vrot.lane.b32.xlu0 %v306, 124
          %v478 = vpop.permute.xlu0 %477
          %479 = vrot.lane.b32.xlu0 %v307, 124
          %v480 = vpop.permute.xlu0 %479
          %481 = vrot.lane.b32.xlu0 %v308, 124
          %v482 = vpop.permute.xlu0 %481
          %483 = vrot.lane.b32.xlu0 %v309, 124
          %v484 = vpop.permute.xlu0 %483
          %485 = vrot.lane.b32.xlu0 %v310, 124
          %v486 = vpop.permute.xlu0 %485
          %487 = vrot.lane.b32.xlu0 %v311, 124
          %v488 = vpop.permute.xlu0 %487
          %489 = vrot.lane.b32.xlu0 %v312, 124
          %v490 = vpop.permute.xlu0 %489
          %491 = vrot.lane.b32.xlu0 %v313, 124
          %v492 = vpop.permute.xlu0 %491
          %v493 = vrot.slane %v478, 4
          %v494 = vrot.slane %v480, 4
          %v495 = vrot.slane %v482, 4
          %v496 = vrot.slane %v484, 4
          %v497 = vrot.slane %v486, 4
          %v498 = vrot.slane %v488, 4
          %v499 = vrot.slane %v490, 4
          %v500 = vrot.slane %v492, 4
          %vm501 = vcmask 1014784
          %v502 = vsel %vm501, %v478, %v493
          %v503 = vsel %vm501, %v480, %v494
          %v504 = vsel %vm501, %v482, %v495
          %v505 = vsel %vm501, %v484, %v496
          %v506 = vsel %vm501, %v486, %v497
          %v507 = vsel %vm501, %v488, %v498
          %v508 = vsel %vm501, %v490, %v499
          %v509 = vsel %vm501, %v492, %v500
          %518 = vst [vmem:[#allocation2 + $0x80] sm:$0xf] %v502
          %519 = vst [vmem:[#allocation2 + $0x84] sm:$0xf] %v503
          %520 = vst [vmem:[#allocation2 + $0x88] sm:$0xf] %v504
          %521 = vst [vmem:[#allocation2 + $0x8c] sm:$0xf] %v505
          %522 = vst [vmem:[#allocation2 + $0x90] sm:$0xf] %v506
          %523 = vst [vmem:[#allocation2 + $0x94] sm:$0xf] %v507
          %524 = vst [vmem:[#allocation2 + $0x98] sm:$0xf] %v508
          %525 = vst [vmem:[#allocation2 + $0x9c] sm:$0xf] %v509
          %526 = vst [vmem:[#allocation4] sm:$0xf] %v404
          %527 = vst [vmem:[#allocation4 + $0x4] sm:$0xf] %v405
          %528 = vst [vmem:[#allocation4 + $0x8] sm:$0xf] %v406
          %529 = vst [vmem:[#allocation4 + $0xc] sm:$0xf] %v407
          %530 = vst [vmem:[#allocation4 + $0x10] sm:$0xf] %v408
          %531 = vst [vmem:[#allocation4 + $0x14] sm:$0xf] %v409
          %532 = vst [vmem:[#allocation4 + $0x18] sm:$0xf] %v410
          %533 = vst [vmem:[#allocation4 + $0x1c] sm:$0xf] %v411
          %v534 = vld [vmem:[#allocation10] sm:$0xff]
          %v535 = vld [vmem:[#allocation10 + $0x8] sm:$0xf]
          %v536 = vld [vmem:[#allocation10 + $0xc] sm:$0xff]
          %v537 = vld [vmem:[#allocation10 + $0x14] sm:$0xf]
          %v538 = vld [vmem:[#allocation10 + $0x18] sm:$0xff]
          %v539 = vld [vmem:[#allocation10 + $0x20] sm:$0xf]
          %v540 = vld [vmem:[#allocation10 + $0x24] sm:$0xff]
          %v541 = vld [vmem:[#allocation10 + $0x2c] sm:$0xf]
          %v542 = vld [vmem:[#allocation10 + $0x30] sm:$0xff]
          %v543 = vld [vmem:[#allocation10 + $0x38] sm:$0xf]
          %v544 = vld [vmem:[#allocation10 + $0x3c] sm:$0xff]
          %v545 = vld [vmem:[#allocation10 + $0x44] sm:$0xf]
          %v546 = vld [vmem:[#allocation10 + $0x48] sm:$0xff]
          %v547 = vld [vmem:[#allocation10 + $0x50] sm:$0xf]
          %v548 = vld [vmem:[#allocation10 + $0x54] sm:$0xff]
          %v549 = vld [vmem:[#allocation10 + $0x5c] sm:$0xf]
          %v550 = vld [vmem:[#allocation2] sm:$0xf]
          %v551 = vld [vmem:[#allocation2 + $0x4] sm:$0xf]
          %v552 = vld [vmem:[#allocation2 + $0x8] sm:$0xf]
          %v553 = vld [vmem:[#allocation2 + $0xc] sm:$0xf]
          %v554 = vld [vmem:[#allocation2 + $0x10] sm:$0xf]
          %v555 = vld [vmem:[#allocation2 + $0x14] sm:$0xf]
          %v556 = vld [vmem:[#allocation2 + $0x18] sm:$0xf]
          %v557 = vld [vmem:[#allocation2 + $0x1c] sm:$0xf]
          %v558 = vld [vmem:[#allocation2 + $0x20] sm:$0xf]
          %v559 = vld [vmem:[#allocation2 + $0x24] sm:$0xf]
          %v560 = vld [vmem:[#allocation2 + $0x28] sm:$0xf]
          %v561 = vld [vmem:[#allocation2 + $0x2c] sm:$0xf]
          %v562 = vld [vmem:[#allocation2 + $0x30] sm:$0xf]
          %v563 = vld [vmem:[#allocation2 + $0x34] sm:$0xf]
          %v564 = vld [vmem:[#allocation2 + $0x38] sm:$0xf]
          %v565 = vld [vmem:[#allocation2 + $0x3c] sm:$0xf]
          %v566 = vld [vmem:[#allocation2 + $0x40] sm:$0xf]
          %v567 = vld [vmem:[#allocation2 + $0x44] sm:$0xf]
          %v568 = vld [vmem:[#allocation2 + $0x48] sm:$0xf]
          %v569 = vld [vmem:[#allocation2 + $0x4c] sm:$0xf]
          %v570 = vld [vmem:[#allocation2 + $0x50] sm:$0xf]
          %v571 = vld [vmem:[#allocation2 + $0x54] sm:$0xf]
          %v572 = vld [vmem:[#allocation2 + $0x58] sm:$0xf]
          %v573 = vld [vmem:[#allocation2 + $0x5c] sm:$0xf]
          %v574 = vld [vmem:[#allocation2 + $0x60] sm:$0xf]
          %v575 = vld [vmem:[#allocation2 + $0x64] sm:$0xf]
          %v576 = vld [vmem:[#allocation2 + $0x68] sm:$0xf]
          %v577 = vld [vmem:[#allocation2 + $0x6c] sm:$0xf]
          %v578 = vld [vmem:[#allocation2 + $0x70] sm:$0xf]
          %v579 = vld [vmem:[#allocation2 + $0x74] sm:$0xf]
          %v580 = vld [vmem:[#allocation2 + $0x78] sm:$0xf]
          %v581 = vld [vmem:[#allocation2 + $0x7c] sm:$0xf]
          %v582 = vld [vmem:[#allocation2 + $0x80] sm:$0xf]
          %v583 = vld [vmem:[#allocation2 + $0x84] sm:$0xf]
          %v584 = vld [vmem:[#allocation2 + $0x88] sm:$0xf]
          %v585 = vld [vmem:[#allocation2 + $0x8c] sm:$0xf]
          %v586 = vld [vmem:[#allocation2 + $0x90] sm:$0xf]
          %v587 = vld [vmem:[#allocation2 + $0x94] sm:$0xf]
          %v588 = vld [vmem:[#allocation2 + $0x98] sm:$0xf]
          %v589 = vld [vmem:[#allocation2 + $0x9c] sm:$0xf]
          %591 = vset.pattern.permute.xlu0 0
          %592 = vperm.xlu0 %591, %v281
          %v593 = vpop.permute.xlu0 %592
          %596 = vset.pattern.permute.xlu0 0
          %597 = vperm.xlu0 %596, %v282
          %v598 = vpop.permute.xlu0 %597
          %601 = vset.pattern.permute.xlu0 0
          %602 = vperm.xlu0 %601, %v283
          %v603 = vpop.permute.xlu0 %602
          %606 = vset.pattern.permute.xlu0 0
          %607 = vperm.xlu0 %606, %v284
          %v608 = vpop.permute.xlu0 %607
          %611 = vset.pattern.permute.xlu0 0
          %612 = vperm.xlu0 %611, %v285
          %v613 = vpop.permute.xlu0 %612
          %616 = vset.pattern.permute.xlu0 0
          %617 = vperm.xlu0 %616, %v286
          %v618 = vpop.permute.xlu0 %617
          %621 = vset.pattern.permute.xlu0 0
          %622 = vperm.xlu0 %621, %v287
          %v623 = vpop.permute.xlu0 %622
          %626 = vset.pattern.permute.xlu0 0
          %627 = vperm.xlu0 %626, %v288
          %v628 = vpop.permute.xlu0 %627
          %v646 = vunpack.c.l.b16 %v534
          %v647 = vunpack.c.h.b16 %v534
          %v648 = vunpack.c.l.b16 %v535
          %v649 = vunpack.c.l.b16 %v536
          %v650 = vunpack.c.h.b16 %v536
          %v651 = vunpack.c.l.b16 %v537
          %v652 = vunpack.c.l.b16 %v538
          %v653 = vunpack.c.h.b16 %v538
          %v654 = vunpack.c.l.b16 %v539
          %v655 = vunpack.c.l.b16 %v540
          %v656 = vunpack.c.h.b16 %v540
          %v657 = vunpack.c.l.b16 %v541
          %v658 = vunpack.c.l.b16 %v542
          %v659 = vunpack.c.h.b16 %v542
          %v660 = vunpack.c.l.b16 %v543
          %v661 = vunpack.c.l.b16 %v544
          %v662 = vunpack.c.h.b16 %v544
          %v663 = vunpack.c.l.b16 %v545
          %v664 = vunpack.c.l.b16 %v546
          %v665 = vunpack.c.h.b16 %v546
          %v666 = vunpack.c.l.b16 %v547
          %v667 = vunpack.c.l.b16 %v548
          %v668 = vunpack.c.h.b16 %v548
          %v669 = vunpack.c.l.b16 %v549
          %v670 = vpack.c.b16 %v649, %v646
          %v671 = vpack.c.b16 %v650, %v647
          %v672 = vpack.c.b16 %v651, %v648
          %v673 = vpack.c.b16 %v655, %v652
          %v674 = vpack.c.b16 %v656, %v653
          %v675 = vpack.c.b16 %v657, %v654
          %v676 = vpack.c.b16 %v661, %v658
          %v677 = vpack.c.b16 %v662, %v659
          %v678 = vpack.c.b16 %v663, %v660
          %v679 = vpack.c.b16 %v667, %v664
          %v680 = vpack.c.b16 %v668, %v665
          %v681 = vpack.c.b16 %v669, %v666
          %v730 = vunpack.c.l.b16 %v550
          %v731 = vunpack.c.l.b16 %v551
          %v732 = vunpack.c.l.b16 %v552
          %v733 = vunpack.c.l.b16 %v553
          %v734 = vunpack.c.l.b16 %v554
          %v735 = vunpack.c.l.b16 %v555
          %v736 = vunpack.c.l.b16 %v556
          %v737 = vunpack.c.l.b16 %v557
          %v738 = vunpack.c.l.b16 %v558
          %v739 = vunpack.c.l.b16 %v559
          %v740 = vunpack.c.l.b16 %v560
          %v741 = vunpack.c.l.b16 %v561
          %v742 = vunpack.c.l.b16 %v562
          %v743 = vunpack.c.l.b16 %v563
          %v744 = vunpack.c.l.b16 %v564
          %v745 = vunpack.c.l.b16 %v565
          %v746 = vunpack.c.l.b16 %v566
          %v747 = vunpack.c.l.b16 %v567
          %v748 = vunpack.c.l.b16 %v568
          %v749 = vunpack.c.l.b16 %v569
          %v750 = vunpack.c.l.b16 %v570
          %v751 = vunpack.c.l.b16 %v571
          %v752 = vunpack.c.l.b16 %v572
          %v753 = vunpack.c.l.b16 %v573
          %v754 = vunpack.c.l.b16 %v574
          %v755 = vunpack.c.l.b16 %v575
          %v756 = vunpack.c.l.b16 %v576
          %v757 = vunpack.c.l.b16 %v577
          %v758 = vunpack.c.l.b16 %v578
          %v759 = vunpack.c.l.b16 %v579
          %v760 = vunpack.c.l.b16 %v580
          %v761 = vunpack.c.l.b16 %v581
          %v762 = vunpack.c.l.b16 %v582
          %v763 = vunpack.c.l.b16 %v583
          %v764 = vunpack.c.l.b16 %v584
          %v765 = vunpack.c.l.b16 %v585
          %v766 = vunpack.c.l.b16 %v586
          %v767 = vunpack.c.l.b16 %v587
          %v768 = vunpack.c.l.b16 %v588
          %v769 = vunpack.c.l.b16 %v589
          %v770 = vpack.c.b16 %v731, %v730
          %v771 = vpack.c.b16 %v733, %v732
          %v772 = vpack.c.b16 %v735, %v734
          %v773 = vpack.c.b16 %v737, %v736
          %v774 = vpack.c.b16 %v739, %v738
          %v775 = vpack.c.b16 %v741, %v740
          %v776 = vpack.c.b16 %v743, %v742
          %v777 = vpack.c.b16 %v745, %v744
          %v778 = vpack.c.b16 %v747, %v746
          %v779 = vpack.c.b16 %v749, %v748
          %v780 = vpack.c.b16 %v751, %v750
          %v781 = vpack.c.b16 %v753, %v752
          %v782 = vpack.c.b16 %v755, %v754
          %v783 = vpack.c.b16 %v757, %v756
          %v784 = vpack.c.b16 %v759, %v758
          %v785 = vpack.c.b16 %v761, %v760
          %v786 = vpack.c.b16 %v763, %v762
          %v787 = vpack.c.b16 %v765, %v764
          %v788 = vpack.c.b16 %v767, %v766
          %v789 = vpack.c.b16 %v769, %v768
          %vm810 = vcmask 523264
          %v812 = vsel %vm810, %v672, 0
          %v815 = vsel %vm810, %v675, 0
          %v818 = vsel %vm810, %v678, 0
          %v821 = vsel %vm810, %v681, 0
          %823 = vmatpush.bf16.msra.mxu0 %v777
          %824 = vmatpush.bf16.msra.mxu0 %v776
          %825 = vmatpush.bf16.msra.mxu0 %v775
          %826 = vmatpush.bf16.msra.mxu0 %v774
          %827 = vmatpush.bf16.msra.mxu0 %v773
          %828 = vmatpush.bf16.msra.mxu0 %v772
          %829 = vmatpush.bf16.msra.mxu0 %v771
          %830 = vmatpush.bf16.msra.mxu0 %v770
          %831 = vmatmul.bf16.gmra.mxu0 %v670
          %v832 = vpop.f32.mrf.mxu0
          %v833 = vadd.f32 %v593, %v832
          %v834 = vpop.f32.mrf.mxu0
          %v835 = vadd.f32 %v598, %v834
          %836 = vmatmul.bf16.gmra.mxu0 %v673
          %v837 = vpop.f32.mrf.mxu0
          %v838 = vadd.f32 %v603, %v837
          %v839 = vpop.f32.mrf.mxu0
          %v840 = vadd.f32 %v608, %v839
          %841 = vmatmul.bf16.gmra.mxu0 %v676
          %v842 = vpop.f32.mrf.mxu0
          %v843 = vadd.f32 %v613, %v842
          %v844 = vpop.f32.mrf.mxu0
          %v845 = vadd.f32 %v618, %v844
          %846 = vmatmul.bf16.gmra.mxu0 %v679
          %v847 = vpop.f32.mrf.mxu0
          %v848 = vadd.f32 %v623, %v847
          %v849 = vpop.f32.mrf.mxu0
          %v850 = vadd.f32 %v628, %v849
          %851 = vdwg.mxu0
          %852 = vmatpush.bf16.msra.mxu0 %v785
          %853 = vmatpush.bf16.msra.mxu0 %v784
          %854 = vmatpush.bf16.msra.mxu0 %v783
          %855 = vmatpush.bf16.msra.mxu0 %v782
          %856 = vmatpush.bf16.msra.mxu0 %v781
          %857 = vmatpush.bf16.msra.mxu0 %v780
          %858 = vmatpush.bf16.msra.mxu0 %v779
          %859 = vmatpush.bf16.msra.mxu0 %v778
          %860 = vmatmul.bf16.gmra.mxu0 %v671
          %v861 = vpop.f32.mrf.mxu0
          %v862 = vadd.f32 %v833, %v861
          %v863 = vpop.f32.mrf.mxu0
          %v864 = vadd.f32 %v835, %v863
          %865 = vmatmul.bf16.gmra.mxu0 %v674
          %v866 = vpop.f32.mrf.mxu0
          %v867 = vadd.f32 %v838, %v866
          %v868 = vpop.f32.mrf.mxu0
          %v869 = vadd.f32 %v840, %v868
          %870 = vmatmul.bf16.gmra.mxu0 %v677
          %v871 = vpop.f32.mrf.mxu0
          %v872 = vadd.f32 %v843, %v871
          %v873 = vpop.f32.mrf.mxu0
          %v874 = vadd.f32 %v845, %v873
          %875 = vmatmul.bf16.gmra.mxu0 %v680
          %v876 = vpop.f32.mrf.mxu0
          %v877 = vadd.f32 %v848, %v876
          %v878 = vpop.f32.mrf.mxu0
          %v879 = vadd.f32 %v850, %v878
          %880 = vdwg.mxu0
          %881 = vmatpush.bf16.msra.mxu0 0
          %882 = vmatpush.bf16.msra.mxu0 0
          %883 = vmatpush.bf16.msra.mxu0 0
          %884 = vmatpush.bf16.msra.mxu0 0
          %885 = vmatpush.bf16.msra.mxu0 %v789
          %886 = vmatpush.bf16.msra.mxu0 %v788
          %887 = vmatpush.bf16.msra.mxu0 %v787
          %888 = vmatpush.bf16.msra.mxu0 %v786
          %889 = vmatmul.bf16.gmra.mxu0 %v812
          %v890 = vpop.f32.mrf.mxu0
          %v891 = vadd.f32 %v862, %v890
          %v892 = vpop.f32.mrf.mxu0
          %v893 = vadd.f32 %v864, %v892
          %894 = vmatmul.bf16.gmra.mxu0 %v815
          %v895 = vpop.f32.mrf.mxu0
          %v896 = vadd.f32 %v867, %v895
          %v897 = vpop.f32.mrf.mxu0
          %v898 = vadd.f32 %v869, %v897
          %899 = vmatmul.bf16.gmra.mxu0 %v818
          %v900 = vpop.f32.mrf.mxu0
          %v901 = vadd.f32 %v872, %v900
          %v902 = vpop.f32.mrf.mxu0
          %v903 = vadd.f32 %v874, %v902
          %904 = vmatmul.bf16.gmra.mxu0 %v821
          %v905 = vpop.f32.mrf.mxu0
          %v906 = vadd.f32 %v877, %v905
          %v907 = vpop.f32.mrf.mxu0
          %v908 = vadd.f32 %v879, %v907
          %909 = vdwg.mxu0
          %v910 = vmax.f32 %v891, 0.0
          %v911 = vmax.f32 %v893, 0.0
          %v912 = vmax.f32 %v896, 0.0
          %v913 = vmax.f32 %v898, 0.0
          %v914 = vmax.f32 %v901, 0.0
          %v915 = vmax.f32 %v903, 0.0
          %v916 = vmax.f32 %v906, 0.0
          %v917 = vmax.f32 %v908, 0.0
          %v918 = vstv %s261
          %vm919 = vcmp.lt.s32.totalorder %v279, %v918
          %v920 = vsel %vm919, 1, 0
          %vm921 = vcmp.eq.s32.totalorder %v920, 1
          %v922 = vsel %vm921, %v910, 0.0
          %v923 = vsel %vm921, %v911, 0.0
          %v924 = vsel %vm921, %v912, 0.0
          %v925 = vsel %vm921, %v913, 0.0
          %v926 = vsel %vm921, %v914, 0.0
          %v927 = vsel %vm921, %v915, 0.0
          %v928 = vsel %vm921, %v916, 0.0
          %v929 = vsel %vm921, %v917, 0.0
          %v930 = vpack.c.bf16 %v922, %v922
          %v931 = vpack.c.bf16 %v923, %v923
          %v932 = vpack.c.bf16 %v924, %v924
          %v933 = vpack.c.bf16 %v925, %v925
          %v934 = vpack.c.bf16 %v926, %v926
          %v935 = vpack.c.bf16 %v927, %v927
          %v936 = vpack.c.bf16 %v928, %v928
          %v937 = vpack.c.bf16 %v929, %v929
          %938 = vst [vmem:[#allocation3] sm:$0xf] 0
          %939 = vst [vmem:[#allocation3 + $0xc] sm:$0xf] 0
          %940 = vst [vmem:[#allocation3 + $0x18] sm:$0xf] 0
          %941 = vst [vmem:[#allocation3 + $0x24] sm:$0xf] 0
          %942 = vst [vmem:[#allocation3 + $0x30] sm:$0xf] 0
          %943 = vst [vmem:[#allocation3 + $0x3c] sm:$0xf] 0
          %944 = vst [vmem:[#allocation3 + $0x48] sm:$0xf] 0
          %945 = vst [vmem:[#allocation3 + $0x54] sm:$0xf] 0
          %946 = vst [vmem:[#allocation3 + $0x4] sm:$0xf] %v930
          %947 = vst [vmem:[#allocation3 + $0x10] sm:$0xf] %v931
          %948 = vst [vmem:[#allocation3 + $0x1c] sm:$0xf] %v932
          %949 = vst [vmem:[#allocation3 + $0x28] sm:$0xf] %v933
          %950 = vst [vmem:[#allocation3 + $0x34] sm:$0xf] %v934
          %951 = vst [vmem:[#allocation3 + $0x40] sm:$0xf] %v935
          %952 = vst [vmem:[#allocation3 + $0x4c] sm:$0xf] %v936
          %953 = vst [vmem:[#allocation3 + $0x58] sm:$0xf] %v937
          %954 = vst [vmem:[#allocation3 + $0x8] sm:$0xf] 0
          %955 = vst [vmem:[#allocation3 + $0x14] sm:$0xf] 0
          %956 = vst [vmem:[#allocation3 + $0x20] sm:$0xf] 0
          %957 = vst [vmem:[#allocation3 + $0x2c] sm:$0xf] 0
          %958 = vst [vmem:[#allocation3 + $0x38] sm:$0xf] 0
          %959 = vst [vmem:[#allocation3 + $0x44] sm:$0xf] 0
          %960 = vst [vmem:[#allocation3 + $0x50] sm:$0xf] 0
          %961 = vst [vmem:[#allocation3 + $0x5c] sm:$0xf] 0
          %v962 = vld [vmem:[#allocation3] sm:$0xff]
          %v963 = vld [vmem:[#allocation3 + $0xc] sm:$0xff]
          %v964 = vld [vmem:[#allocation3 + $0x18] sm:$0xff]
          %v965 = vld [vmem:[#allocation3 + $0x24] sm:$0xff]
          %v966 = vld [vmem:[#allocation3 + $0x30] sm:$0xff]
          %v967 = vld [vmem:[#allocation3 + $0x3c] sm:$0xff]
          %v968 = vld [vmem:[#allocation3 + $0x48] sm:$0xff]
          %v969 = vld [vmem:[#allocation3 + $0x54] sm:$0xff]
          %978 = vrot.lane.b32.xlu0 %v962, 2
          %v979 = vpop.permute.xlu0 %978
          %980 = vrot.lane.b32.xlu0 %v963, 2
          %v981 = vpop.permute.xlu0 %980
          %982 = vrot.lane.b32.xlu0 %v964, 2
          %v983 = vpop.permute.xlu0 %982
          %984 = vrot.lane.b32.xlu0 %v965, 2
          %v985 = vpop.permute.xlu0 %984
          %986 = vrot.lane.b32.xlu0 %v966, 2
          %v987 = vpop.permute.xlu0 %986
          %988 = vrot.lane.b32.xlu0 %v967, 2
          %v989 = vpop.permute.xlu0 %988
          %990 = vrot.lane.b32.xlu0 %v968, 2
          %v991 = vpop.permute.xlu0 %990
          %992 = vrot.lane.b32.xlu0 %v969, 2
          %v993 = vpop.permute.xlu0 %992
          %v994 = vrot.slane %v979, 4
          %v995 = vrot.slane %v981, 4
          %v996 = vrot.slane %v983, 4
          %v997 = vrot.slane %v985, 4
          %v998 = vrot.slane %v987, 4
          %v999 = vrot.slane %v989, 4
          %v1000 = vrot.slane %v991, 4
          %v1001 = vrot.slane %v993, 4
          %vm1002 = vcmask 15360
          %v1003 = vsel %vm1002, %v979, %v994
          %v1004 = vsel %vm1002, %v981, %v995
          %v1005 = vsel %vm1002, %v983, %v996
          %v1006 = vsel %vm1002, %v985, %v997
          %v1007 = vsel %vm1002, %v987, %v998
          %v1008 = vsel %vm1002, %v989, %v999
          %v1009 = vsel %vm1002, %v991, %v1000
          %v1010 = vsel %vm1002, %v993, %v1001
          %1019 = vst [vmem:[#allocation2] sm:$0xf] %v1003
          %1020 = vst [vmem:[#allocation2 + $0x4] sm:$0xf] %v1004
          %1021 = vst [vmem:[#allocation2 + $0x8] sm:$0xf] %v1005
          %1022 = vst [vmem:[#allocation2 + $0xc] sm:$0xf] %v1006
          %1023 = vst [vmem:[#allocation2 + $0x10] sm:$0xf] %v1007
          %1024 = vst [vmem:[#allocation2 + $0x14] sm:$0xf] %v1008
          %1025 = vst [vmem:[#allocation2 + $0x18] sm:$0xf] %v1009
          %1026 = vst [vmem:[#allocation2 + $0x1c] sm:$0xf] %v1010
          %v1027 = vld [vmem:[#allocation3] sm:$0xff]
          %v1028 = vld [vmem:[#allocation3 + $0xc] sm:$0xff]
          %v1029 = vld [vmem:[#allocation3 + $0x18] sm:$0xff]
          %v1030 = vld [vmem:[#allocation3 + $0x24] sm:$0xff]
          %v1031 = vld [vmem:[#allocation3 + $0x30] sm:$0xff]
          %v1032 = vld [vmem:[#allocation3 + $0x3c] sm:$0xff]
          %v1033 = vld [vmem:[#allocation3 + $0x48] sm:$0xff]
          %v1034 = vld [vmem:[#allocation3 + $0x54] sm:$0xff]
          %1043 = vrot.lane.b32.xlu0 %v1027, 1
          %v1044 = vpop.permute.xlu0 %1043
          %1045 = vrot.lane.b32.xlu0 %v1028, 1
          %v1046 = vpop.permute.xlu0 %1045
          %1047 = vrot.lane.b32.xlu0 %v1029, 1
          %v1048 = vpop.permute.xlu0 %1047
          %1049 = vrot.lane.b32.xlu0 %v1030, 1
          %v1050 = vpop.permute.xlu0 %1049
          %1051 = vrot.lane.b32.xlu0 %v1031, 1
          %v1052 = vpop.permute.xlu0 %1051
          %1053 = vrot.lane.b32.xlu0 %v1032, 1
          %v1054 = vpop.permute.xlu0 %1053
          %1055 = vrot.lane.b32.xlu0 %v1033, 1
          %v1056 = vpop.permute.xlu0 %1055
          %1057 = vrot.lane.b32.xlu0 %v1034, 1
          %v1058 = vpop.permute.xlu0 %1057
          %v1059 = vrot.slane %v1044, 4
          %v1060 = vrot.slane %v1046, 4
          %v1061 = vrot.slane %v1048, 4
          %v1062 = vrot.slane %v1050, 4
          %v1063 = vrot.slane %v1052, 4
          %v1064 = vrot.slane %v1054, 4
          %v1065 = vrot.slane %v1056, 4
          %v1066 = vrot.slane %v1058, 4
          %vm1067 = vcmask 7168
          %v1068 = vsel %vm1067, %v1044, %v1059
          %v1069 = vsel %vm1067, %v1046, %v1060
          %v1070 = vsel %vm1067, %v1048, %v1061
          %v1071 = vsel %vm1067, %v1050, %v1062
          %v1072 = vsel %vm1067, %v1052, %v1063
          %v1073 = vsel %vm1067, %v1054, %v1064
          %v1074 = vsel %vm1067, %v1056, %v1065
          %v1075 = vsel %vm1067, %v1058, %v1066
          %1084 = vst [vmem:[#allocation2 + $0x20] sm:$0xf] %v1068
          %1085 = vst [vmem:[#allocation2 + $0x24] sm:$0xf] %v1069
          %1086 = vst [vmem:[#allocation2 + $0x28] sm:$0xf] %v1070
          %1087 = vst [vmem:[#allocation2 + $0x2c] sm:$0xf] %v1071
          %1088 = vst [vmem:[#allocation2 + $0x30] sm:$0xf] %v1072
          %1089 = vst [vmem:[#allocation2 + $0x34] sm:$0xf] %v1073
          %1090 = vst [vmem:[#allocation2 + $0x38] sm:$0xf] %v1074
          %1091 = vst [vmem:[#allocation2 + $0x3c] sm:$0xf] %v1075
          %v1092 = vld [vmem:[#allocation3 + $0x4] sm:$0xf]
          %v1093 = vld [vmem:[#allocation3 + $0x10] sm:$0xf]
          %v1094 = vld [vmem:[#allocation3 + $0x1c] sm:$0xf]
          %v1095 = vld [vmem:[#allocation3 + $0x28] sm:$0xf]
          %v1096 = vld [vmem:[#allocation3 + $0x34] sm:$0xf]
          %v1097 = vld [vmem:[#allocation3 + $0x40] sm:$0xf]
          %v1098 = vld [vmem:[#allocation3 + $0x4c] sm:$0xf]
          %v1099 = vld [vmem:[#allocation3 + $0x58] sm:$0xf]
          %1100 = vst [vmem:[#allocation2 + $0x40] sm:$0xf] %v1092
          %1101 = vst [vmem:[#allocation2 + $0x44] sm:$0xf] %v1093
          %1102 = vst [vmem:[#allocation2 + $0x48] sm:$0xf] %v1094
          %1103 = vst [vmem:[#allocation2 + $0x4c] sm:$0xf] %v1095
          %1104 = vst [vmem:[#allocation2 + $0x50] sm:$0xf] %v1096
          %1105 = vst [vmem:[#allocation2 + $0x54] sm:$0xf] %v1097
          %1106 = vst [vmem:[#allocation2 + $0x58] sm:$0xf] %v1098
          %1107 = vst [vmem:[#allocation2 + $0x5c] sm:$0xf] %v1099
          %v1108 = vld [vmem:[#allocation3 + $0x4] sm:$0xff]
          %v1109 = vld [vmem:[#allocation3 + $0x10] sm:$0xff]
          %v1110 = vld [vmem:[#allocation3 + $0x1c] sm:$0xff]
          %v1111 = vld [vmem:[#allocation3 + $0x28] sm:$0xff]
          %v1112 = vld [vmem:[#allocation3 + $0x34] sm:$0xff]
          %v1113 = vld [vmem:[#allocation3 + $0x40] sm:$0xff]
          %v1114 = vld [vmem:[#allocation3 + $0x4c] sm:$0xff]
          %v1115 = vld [vmem:[#allocation3 + $0x58] sm:$0xff]
          %1124 = vrot.lane.b32.xlu0 %v1108, 127
          %v1125 = vpop.permute.xlu0 %1124
          %1126 = vrot.lane.b32.xlu0 %v1109, 127
          %v1127 = vpop.permute.xlu0 %1126
          %1128 = vrot.lane.b32.xlu0 %v1110, 127
          %v1129 = vpop.permute.xlu0 %1128
          %1130 = vrot.lane.b32.xlu0 %v1111, 127
          %v1131 = vpop.permute.xlu0 %1130
          %1132 = vrot.lane.b32.xlu0 %v1112, 127
          %v1133 = vpop.permute.xlu0 %1132
          %1134 = vrot.lane.b32.xlu0 %v1113, 127
          %v1135 = vpop.permute.xlu0 %1134
          %1136 = vrot.lane.b32.xlu0 %v1114, 127
          %v1137 = vpop.permute.xlu0 %1136
          %1138 = vrot.lane.b32.xlu0 %v1115, 127
          %v1139 = vpop.permute.xlu0 %1138
          %v1140 = vrot.slane %v1125, 4
          %v1141 = vrot.slane %v1127, 4
          %v1142 = vrot.slane %v1129, 4
          %v1143 = vrot.slane %v1131, 4
          %v1144 = vrot.slane %v1133, 4
          %v1145 = vrot.slane %v1135, 4
          %v1146 = vrot.slane %v1137, 4
          %v1147 = vrot.slane %v1139, 4
          %v1148 = vsel %vm354, %v1125, %v1140
          %v1149 = vsel %vm354, %v1127, %v1141
          %v1150 = vsel %vm354, %v1129, %v1142
          %v1151 = vsel %vm354, %v1131, %v1143
          %v1152 = vsel %vm354, %v1133, %v1144
          %v1153 = vsel %vm354, %v1135, %v1145
          %v1154 = vsel %vm354, %v1137, %v1146
          %v1155 = vsel %vm354, %v1139, %v1147
          %1164 = vst [vmem:[#allocation2 + $0x60] sm:$0xf] %v1148
          %1165 = vst [vmem:[#allocation2 + $0x64] sm:$0xf] %v1149
          %1166 = vst [vmem:[#allocation2 + $0x68] sm:$0xf] %v1150
          %1167 = vst [vmem:[#allocation2 + $0x6c] sm:$0xf] %v1151
          %1168 = vst [vmem:[#allocation2 + $0x70] sm:$0xf] %v1152
          %1169 = vst [vmem:[#allocation2 + $0x74] sm:$0xf] %v1153
          %1170 = vst [vmem:[#allocation2 + $0x78] sm:$0xf] %v1154
          %1171 = vst [vmem:[#allocation2 + $0x7c] sm:$0xf] %v1155
          %v1172 = vld [vmem:[#allocation3 + $0x4] sm:$0xff]
          %v1173 = vld [vmem:[#allocation3 + $0x10] sm:$0xff]
          %v1174 = vld [vmem:[#allocation3 + $0x1c] sm:$0xff]
          %v1175 = vld [vmem:[#allocation3 + $0x28] sm:$0xff]
          %v1176 = vld [vmem:[#allocation3 + $0x34] sm:$0xff]
          %v1177 = vld [vmem:[#allocation3 + $0x40] sm:$0xff]
          %v1178 = vld [vmem:[#allocation3 + $0x4c] sm:$0xff]
          %v1179 = vld [vmem:[#allocation3 + $0x58] sm:$0xff]
          %1188 = vrot.lane.b32.xlu0 %v1172, 126
          %v1189 = vpop.permute.xlu0 %1188
          %1190 = vrot.lane.b32.xlu0 %v1173, 126
          %v1191 = vpop.permute.xlu0 %1190
          %1192 = vrot.lane.b32.xlu0 %v1174, 126
          %v1193 = vpop.permute.xlu0 %1192
          %1194 = vrot.lane.b32.xlu0 %v1175, 126
          %v1195 = vpop.permute.xlu0 %1194
          %1196 = vrot.lane.b32.xlu0 %v1176, 126
          %v1197 = vpop.permute.xlu0 %1196
          %1198 = vrot.lane.b32.xlu0 %v1177, 126
          %v1199 = vpop.permute.xlu0 %1198
          %1200 = vrot.lane.b32.xlu0 %v1178, 126
          %v1201 = vpop.permute.xlu0 %1200
          %1202 = vrot.lane.b32.xlu0 %v1179, 126
          %v1203 = vpop.permute.xlu0 %1202
          %v1204 = vrot.slane %v1189, 4
          %v1205 = vrot.slane %v1191, 4
          %v1206 = vrot.slane %v1193, 4
          %v1207 = vrot.slane %v1195, 4
          %v1208 = vrot.slane %v1197, 4
          %v1209 = vrot.slane %v1199, 4
          %v1210 = vrot.slane %v1201, 4
          %v1211 = vrot.slane %v1203, 4
          %v1212 = vsel %vm403, %v1189, %v1204
          %v1213 = vsel %vm403, %v1191, %v1205
          %v1214 = vsel %vm403, %v1193, %v1206
          %v1215 = vsel %vm403, %v1195, %v1207
          %v1216 = vsel %vm403, %v1197, %v1208
          %v1217 = vsel %vm403, %v1199, %v1209
          %v1218 = vsel %vm403, %v1201, %v1210
          %v1219 = vsel %vm403, %v1203, %v1211
          %1228 = vst [vmem:[#allocation2 + $0x80] sm:$0xf] %v1212
          %1229 = vst [vmem:[#allocation2 + $0x84] sm:$0xf] %v1213
          %1230 = vst [vmem:[#allocation2 + $0x88] sm:$0xf] %v1214
          %1231 = vst [vmem:[#allocation2 + $0x8c] sm:$0xf] %v1215
          %1232 = vst [vmem:[#allocation2 + $0x90] sm:$0xf] %v1216
          %1233 = vst [vmem:[#allocation2 + $0x94] sm:$0xf] %v1217
          %1234 = vst [vmem:[#allocation2 + $0x98] sm:$0xf] %v1218
          %1235 = vst [vmem:[#allocation2 + $0x9c] sm:$0xf] %v1219
          %v1236 = vld [vmem:[#allocation12] sm:$0xff]
          %v1237 = vld [vmem:[#allocation12 + $0x8] sm:$0xf]
          %v1238 = vld [vmem:[#allocation12 + $0xc] sm:$0xff]
          %v1239 = vld [vmem:[#allocation12 + $0x14] sm:$0xf]
          %v1240 = vld [vmem:[#allocation12 + $0x18] sm:$0xff]
          %v1241 = vld [vmem:[#allocation12 + $0x20] sm:$0xf]
          %v1242 = vld [vmem:[#allocation12 + $0x24] sm:$0xff]
          %v1243 = vld [vmem:[#allocation12 + $0x2c] sm:$0xf]
          %v1244 = vld [vmem:[#allocation12 + $0x30] sm:$0xff]
          %v1245 = vld [vmem:[#allocation12 + $0x38] sm:$0xf]
          %v1246 = vld [vmem:[#allocation12 + $0x3c] sm:$0xff]
          %v1247 = vld [vmem:[#allocation12 + $0x44] sm:$0xf]
          %v1248 = vld [vmem:[#allocation12 + $0x48] sm:$0xff]
          %v1249 = vld [vmem:[#allocation12 + $0x50] sm:$0xf]
          %v1250 = vld [vmem:[#allocation12 + $0x54] sm:$0xff]
          %v1251 = vld [vmem:[#allocation12 + $0x5c] sm:$0xf]
          %v1252 = vld [vmem:[#allocation2] sm:$0xf]
          %v1253 = vld [vmem:[#allocation2 + $0x4] sm:$0xf]
          %v1254 = vld [vmem:[#allocation2 + $0x8] sm:$0xf]
          %v1255 = vld [vmem:[#allocation2 + $0xc] sm:$0xf]
          %v1256 = vld [vmem:[#allocation2 + $0x10] sm:$0xf]
          %v1257 = vld [vmem:[#allocation2 + $0x14] sm:$0xf]
          %v1258 = vld [vmem:[#allocation2 + $0x18] sm:$0xf]
          %v1259 = vld [vmem:[#allocation2 + $0x1c] sm:$0xf]
          %v1260 = vld [vmem:[#allocation2 + $0x20] sm:$0xf]
          %v1261 = vld [vmem:[#allocation2 + $0x24] sm:$0xf]
          %v1262 = vld [vmem:[#allocation2 + $0x28] sm:$0xf]
          %v1263 = vld [vmem:[#allocation2 + $0x2c] sm:$0xf]
          %v1264 = vld [vmem:[#allocation2 + $0x30] sm:$0xf]
          %v1265 = vld [vmem:[#allocation2 + $0x34] sm:$0xf]
          %v1266 = vld [vmem:[#allocation2 + $0x38] sm:$0xf]
          %v1267 = vld [vmem:[#allocation2 + $0x3c] sm:$0xf]
          %v1268 = vld [vmem:[#allocation2 + $0x40] sm:$0xf]
          %v1269 = vld [vmem:[#allocation2 + $0x44] sm:$0xf]
          %v1270 = vld [vmem:[#allocation2 + $0x48] sm:$0xf]
          %v1271 = vld [vmem:[#allocation2 + $0x4c] sm:$0xf]
          %v1272 = vld [vmem:[#allocation2 + $0x50] sm:$0xf]
          %v1273 = vld [vmem:[#allocation2 + $0x54] sm:$0xf]
          %v1274 = vld [vmem:[#allocation2 + $0x58] sm:$0xf]
          %v1275 = vld [vmem:[#allocation2 + $0x5c] sm:$0xf]
          %v1276 = vld [vmem:[#allocation2 + $0x60] sm:$0xf]
          %v1277 = vld [vmem:[#allocation2 + $0x64] sm:$0xf]
          %v1278 = vld [vmem:[#allocation2 + $0x68] sm:$0xf]
          %v1279 = vld [vmem:[#allocation2 + $0x6c] sm:$0xf]
          %v1280 = vld [vmem:[#allocation2 + $0x70] sm:$0xf]
          %v1281 = vld [vmem:[#allocation2 + $0x74] sm:$0xf]
          %v1282 = vld [vmem:[#allocation2 + $0x78] sm:$0xf]
          %v1283 = vld [vmem:[#allocation2 + $0x7c] sm:$0xf]
          %v1284 = vld [vmem:[#allocation2 + $0x80] sm:$0xf]
          %v1285 = vld [vmem:[#allocation2 + $0x84] sm:$0xf]
          %v1286 = vld [vmem:[#allocation2 + $0x88] sm:$0xf]
          %v1287 = vld [vmem:[#allocation2 + $0x8c] sm:$0xf]
          %v1288 = vld [vmem:[#allocation2 + $0x90] sm:$0xf]
          %v1289 = vld [vmem:[#allocation2 + $0x94] sm:$0xf]
          %v1290 = vld [vmem:[#allocation2 + $0x98] sm:$0xf]
          %v1291 = vld [vmem:[#allocation2 + $0x9c] sm:$0xf]
          %1292 = vset.pattern.permute.xlu0 1
          %1293 = vperm.xlu0 %1292, %v281
          %v1294 = vpop.permute.xlu0 %1293
          %1296 = vset.pattern.permute.xlu0 1
          %1297 = vperm.xlu0 %1296, %v282
          %v1298 = vpop.permute.xlu0 %1297
          %1300 = vset.pattern.permute.xlu0 1
          %1301 = vperm.xlu0 %1300, %v283
          %v1302 = vpop.permute.xlu0 %1301
          %1304 = vset.pattern.permute.xlu0 1
          %1305 = vperm.xlu0 %1304, %v284
          %v1306 = vpop.permute.xlu0 %1305
          %1308 = vset.pattern.permute.xlu0 1
          %1309 = vperm.xlu0 %1308, %v285
          %v1310 = vpop.permute.xlu0 %1309
          %1312 = vset.pattern.permute.xlu0 1
          %1313 = vperm.xlu0 %1312, %v286
          %v1314 = vpop.permute.xlu0 %1313
          %1316 = vset.pattern.permute.xlu0 1
          %1317 = vperm.xlu0 %1316, %v287
          %v1318 = vpop.permute.xlu0 %1317
          %1320 = vset.pattern.permute.xlu0 1
          %1321 = vperm.xlu0 %1320, %v288
          %v1322 = vpop.permute.xlu0 %1321
          %v1340 = vunpack.c.l.b16 %v1236
          %v1341 = vunpack.c.h.b16 %v1236
          %v1342 = vunpack.c.l.b16 %v1237
          %v1343 = vunpack.c.l.b16 %v1238
          %v1344 = vunpack.c.h.b16 %v1238
          %v1345 = vunpack.c.l.b16 %v1239
          %v1346 = vunpack.c.l.b16 %v1240
          %v1347 = vunpack.c.h.b16 %v1240
          %v1348 = vunpack.c.l.b16 %v1241
          %v1349 = vunpack.c.l.b16 %v1242
          %v1350 = vunpack.c.h.b16 %v1242
          %v1351 = vunpack.c.l.b16 %v1243
          %v1352 = vunpack.c.l.b16 %v1244
          %v1353 = vunpack.c.h.b16 %v1244
          %v1354 = vunpack.c.l.b16 %v1245
          %v1355 = vunpack.c.l.b16 %v1246
          %v1356 = vunpack.c.h.b16 %v1246
          %v1357 = vunpack.c.l.b16 %v1247
          %v1358 = vunpack.c.l.b16 %v1248
          %v1359 = vunpack.c.h.b16 %v1248
          %v1360 = vunpack.c.l.b16 %v1249
          %v1361 = vunpack.c.l.b16 %v1250
          %v1362 = vunpack.c.h.b16 %v1250
          %v1363 = vunpack.c.l.b16 %v1251
          %v1364 = vpack.c.b16 %v1343, %v1340
          %v1365 = vpack.c.b16 %v1344, %v1341
          %v1366 = vpack.c.b16 %v1345, %v1342
          %v1367 = vpack.c.b16 %v1349, %v1346
          %v1368 = vpack.c.b16 %v1350, %v1347
          %v1369 = vpack.c.b16 %v1351, %v1348
          %v1370 = vpack.c.b16 %v1355, %v1352
          %v1371 = vpack.c.b16 %v1356, %v1353
          %v1372 = vpack.c.b16 %v1357, %v1354
          %v1373 = vpack.c.b16 %v1361, %v1358
          %v1374 = vpack.c.b16 %v1362, %v1359
          %v1375 = vpack.c.b16 %v1363, %v1360
          %v1424 = vunpack.c.l.b16 %v1252
          %v1425 = vunpack.c.l.b16 %v1253
          %v1426 = vunpack.c.l.b16 %v1254
          %v1427 = vunpack.c.l.b16 %v1255
          %v1428 = vunpack.c.l.b16 %v1256
          %v1429 = vunpack.c.l.b16 %v1257
          %v1430 = vunpack.c.l.b16 %v1258
          %v1431 = vunpack.c.l.b16 %v1259
          %v1432 = vunpack.c.l.b16 %v1260
          %v1433 = vunpack.c.l.b16 %v1261
          %v1434 = vunpack.c.l.b16 %v1262
          %v1435 = vunpack.c.l.b16 %v1263
          %v1436 = vunpack.c.l.b16 %v1264
          %v1437 = vunpack.c.l.b16 %v1265
          %v1438 = vunpack.c.l.b16 %v1266
          %v1439 = vunpack.c.l.b16 %v1267
          %v1440 = vunpack.c.l.b16 %v1268
          %v1441 = vunpack.c.l.b16 %v1269
          %v1442 = vunpack.c.l.b16 %v1270
          %v1443 = vunpack.c.l.b16 %v1271
          %v1444 = vunpack.c.l.b16 %v1272
          %v1445 = vunpack.c.l.b16 %v1273
          %v1446 = vunpack.c.l.b16 %v1274
          %v1447 = vunpack.c.l.b16 %v1275
          %v1448 = vunpack.c.l.b16 %v1276
          %v1449 = vunpack.c.l.b16 %v1277
          %v1450 = vunpack.c.l.b16 %v1278
          %v1451 = vunpack.c.l.b16 %v1279
          %v1452 = vunpack.c.l.b16 %v1280
          %v1453 = vunpack.c.l.b16 %v1281
          %v1454 = vunpack.c.l.b16 %v1282
          %v1455 = vunpack.c.l.b16 %v1283
          %v1456 = vunpack.c.l.b16 %v1284
          %v1457 = vunpack.c.l.b16 %v1285
          %v1458 = vunpack.c.l.b16 %v1286
          %v1459 = vunpack.c.l.b16 %v1287
          %v1460 = vunpack.c.l.b16 %v1288
          %v1461 = vunpack.c.l.b16 %v1289
          %v1462 = vunpack.c.l.b16 %v1290
          %v1463 = vunpack.c.l.b16 %v1291
          %v1464 = vpack.c.b16 %v1425, %v1424
          %v1465 = vpack.c.b16 %v1427, %v1426
          %v1466 = vpack.c.b16 %v1429, %v1428
          %v1467 = vpack.c.b16 %v1431, %v1430
          %v1468 = vpack.c.b16 %v1433, %v1432
          %v1469 = vpack.c.b16 %v1435, %v1434
          %v1470 = vpack.c.b16 %v1437, %v1436
          %v1471 = vpack.c.b16 %v1439, %v1438
          %v1472 = vpack.c.b16 %v1441, %v1440
          %v1473 = vpack.c.b16 %v1443, %v1442
          %v1474 = vpack.c.b16 %v1445, %v1444
          %v1475 = vpack.c.b16 %v1447, %v1446
          %v1476 = vpack.c.b16 %v1449, %v1448
          %v1477 = vpack.c.b16 %v1451, %v1450
          %v1478 = vpack.c.b16 %v1453, %v1452
          %v1479 = vpack.c.b16 %v1455, %v1454
          %v1480 = vpack.c.b16 %v1457, %v1456
          %v1481 = vpack.c.b16 %v1459, %v1458
          %v1482 = vpack.c.b16 %v1461, %v1460
          %v1483 = vpack.c.b16 %v1463, %v1462
          %v1505 = vsel %vm810, %v1366, 0
          %v1508 = vsel %vm810, %v1369, 0
          %v1511 = vsel %vm810, %v1372, 0
          %v1514 = vsel %vm810, %v1375, 0
          %1516 = vmatpush.bf16.msra.mxu0 %v1471
          %1517 = vmatpush.bf16.msra.mxu0 %v1470
          %1518 = vmatpush.bf16.msra.mxu0 %v1469
          %1519 = vmatpush.bf16.msra.mxu0 %v1468
          %1520 = vmatpush.bf16.msra.mxu0 %v1467
          %1521 = vmatpush.bf16.msra.mxu0 %v1466
          %1522 = vmatpush.bf16.msra.mxu0 %v1465
          %1523 = vmatpush.bf16.msra.mxu0 %v1464
          %1524 = vmatmul.bf16.gmra.mxu0 %v1364
          %v1525 = vpop.f32.mrf.mxu0
          %v1526 = vadd.f32 %v1294, %v1525
          %v1527 = vpop.f32.mrf.mxu0
          %v1528 = vadd.f32 %v1298, %v1527
          %1529 = vmatmul.bf16.gmra.mxu0 %v1367
          %v1530 = vpop.f32.mrf.mxu0
          %v1531 = vadd.f32 %v1302, %v1530
          %v1532 = vpop.f32.mrf.mxu0
          %v1533 = vadd.f32 %v1306, %v1532
          %1534 = vmatmul.bf16.gmra.mxu0 %v1370
          %v1535 = vpop.f32.mrf.mxu0
          %v1536 = vadd.f32 %v1310, %v1535
          %v1537 = vpop.f32.mrf.mxu0
          %v1538 = vadd.f32 %v1314, %v1537
          %1539 = vmatmul.bf16.gmra.mxu0 %v1373
          %v1540 = vpop.f32.mrf.mxu0
          %v1541 = vadd.f32 %v1318, %v1540
          %v1542 = vpop.f32.mrf.mxu0
          %v1543 = vadd.f32 %v1322, %v1542
          %1544 = vdwg.mxu0
          %1545 = vmatpush.bf16.msra.mxu0 %v1479
          %1546 = vmatpush.bf16.msra.mxu0 %v1478
          %1547 = vmatpush.bf16.msra.mxu0 %v1477
          %1548 = vmatpush.bf16.msra.mxu0 %v1476
          %1549 = vmatpush.bf16.msra.mxu0 %v1475
          %1550 = vmatpush.bf16.msra.mxu0 %v1474
          %1551 = vmatpush.bf16.msra.mxu0 %v1473
          %1552 = vmatpush.bf16.msra.mxu0 %v1472
          %1553 = vmatmul.bf16.gmra.mxu0 %v1365
          %v1554 = vpop.f32.mrf.mxu0
          %v1555 = vadd.f32 %v1526, %v1554
          %v1556 = vpop.f32.mrf.mxu0
          %v1557 = vadd.f32 %v1528, %v1556
          %1558 = vmatmul.bf16.gmra.mxu0 %v1368
          %v1559 = vpop.f32.mrf.mxu0
          %v1560 = vadd.f32 %v1531, %v1559
          %v1561 = vpop.f32.mrf.mxu0
          %v1562 = vadd.f32 %v1533, %v1561
          %1563 = vmatmul.bf16.gmra.mxu0 %v1371
          %v1564 = vpop.f32.mrf.mxu0
          %v1565 = vadd.f32 %v1536, %v1564
          %v1566 = vpop.f32.mrf.mxu0
          %v1567 = vadd.f32 %v1538, %v1566
          %1568 = vmatmul.bf16.gmra.mxu0 %v1374
          %v1569 = vpop.f32.mrf.mxu0
          %v1570 = vadd.f32 %v1541, %v1569
          %v1571 = vpop.f32.mrf.mxu0
          %v1572 = vadd.f32 %v1543, %v1571
          %1573 = vdwg.mxu0
          %1574 = vmatpush.bf16.msra.mxu0 0
          %1575 = vmatpush.bf16.msra.mxu0 0
          %1576 = vmatpush.bf16.msra.mxu0 0
          %1577 = vmatpush.bf16.msra.mxu0 0
          %1578 = vmatpush.bf16.msra.mxu0 %v1483
          %1579 = vmatpush.bf16.msra.mxu0 %v1482
          %1580 = vmatpush.bf16.msra.mxu0 %v1481
          %1581 = vmatpush.bf16.msra.mxu0 %v1480
          %1582 = vmatmul.bf16.gmra.mxu0 %v1505
          %v1583 = vpop.f32.mrf.mxu0
          %v1584 = vadd.f32 %v1555, %v1583
          %v1585 = vpop.f32.mrf.mxu0
          %v1586 = vadd.f32 %v1557, %v1585
          %1587 = vmatmul.bf16.gmra.mxu0 %v1508
          %v1588 = vpop.f32.mrf.mxu0
          %v1589 = vadd.f32 %v1560, %v1588
          %v1590 = vpop.f32.mrf.mxu0
          %v1591 = vadd.f32 %v1562, %v1590
          %1592 = vmatmul.bf16.gmra.mxu0 %v1511
          %v1593 = vpop.f32.mrf.mxu0
          %v1594 = vadd.f32 %v1565, %v1593
          %v1595 = vpop.f32.mrf.mxu0
          %v1596 = vadd.f32 %v1567, %v1595
          %1597 = vmatmul.bf16.gmra.mxu0 %v1514
          %v1598 = vpop.f32.mrf.mxu0
          %v1599 = vadd.f32 %v1570, %v1598
          %v1600 = vpop.f32.mrf.mxu0
          %v1601 = vadd.f32 %v1572, %v1600
          %1602 = vdwg.mxu0
          %v1603 = vld [vmem:[#allocation4] sm:$0xf]
          %v1604 = vld [vmem:[#allocation4 + $0x4] sm:$0xf]
          %v1605 = vld [vmem:[#allocation4 + $0x8] sm:$0xf]
          %v1606 = vld [vmem:[#allocation4 + $0xc] sm:$0xf]
          %v1607 = vld [vmem:[#allocation4 + $0x10] sm:$0xf]
          %v1608 = vld [vmem:[#allocation4 + $0x14] sm:$0xf]
          %v1609 = vld [vmem:[#allocation4 + $0x18] sm:$0xf]
          %v1610 = vld [vmem:[#allocation4 + $0x1c] sm:$0xf]
          %v1611 = vunpack.c.l.bf16 %v1603
          %v1612 = vunpack.c.l.bf16 %v1604
          %v1613 = vunpack.c.l.bf16 %v1605
          %v1614 = vunpack.c.l.bf16 %v1606
          %v1615 = vunpack.c.l.bf16 %v1607
          %v1616 = vunpack.c.l.bf16 %v1608
          %v1617 = vunpack.c.l.bf16 %v1609
          %v1618 = vunpack.c.l.bf16 %v1610
          %v1619 = vadd.f32 %v1584, %v1611
          %v1620 = vadd.f32 %v1586, %v1612
          %v1621 = vadd.f32 %v1589, %v1613
          %v1622 = vadd.f32 %v1591, %v1614
          %v1623 = vadd.f32 %v1594, %v1615
          %v1624 = vadd.f32 %v1596, %v1616
          %v1625 = vadd.f32 %v1599, %v1617
          %v1626 = vadd.f32 %v1601, %v1618
          %v1627 = vadd.f32 %v1619, %v1620
          %v1628 = vadd.f32 %v1627, %v1621
          %v1629 = vadd.f32 %v1628, %v1622
          %v1630 = vadd.f32 %v1629, %v1623
          %v1631 = vadd.f32 %v1630, %v1624
          %v1632 = vadd.f32 %v1631, %v1625
          %v1633 = vadd.f32 %v1632, %v1626
          %v1634 = vrot.slane %v1633, 4
          %v1635 = vadd.f32 %v1633, %v1634
          %v1636 = vrot.slane %v1635, 2
          %v1637 = vadd.f32 %v1635, %v1636
          %v1638 = vrot.slane %v1637, 1
          %v1639 = vadd.f32 %v1637, %v1638
          %v1640 = vmul.f32 %v1639, 0.015625
          %v1641 = vmul.f32 %v1619, %v1619
          %v1642 = vmul.f32 %v1620, %v1620
          %v1643 = vmul.f32 %v1621, %v1621
          %v1644 = vmul.f32 %v1622, %v1622
          %v1645 = vmul.f32 %v1623, %v1623
          %v1646 = vmul.f32 %v1624, %v1624
          %v1647 = vmul.f32 %v1625, %v1625
          %v1648 = vmul.f32 %v1626, %v1626
          %v1649 = vadd.f32 %v1641, %v1642
          %v1650 = vadd.f32 %v1649, %v1643
          %v1651 = vadd.f32 %v1650, %v1644
          %v1652 = vadd.f32 %v1651, %v1645
          %v1653 = vadd.f32 %v1652, %v1646
          %v1654 = vadd.f32 %v1653, %v1647
          %v1655 = vadd.f32 %v1654, %v1648
          %v1656 = vrot.slane %v1655, 4
          %v1657 = vadd.f32 %v1655, %v1656
          %v1658 = vrot.slane %v1657, 2
          %v1659 = vadd.f32 %v1657, %v1658
          %v1660 = vrot.slane %v1659, 1
          %v1661 = vadd.f32 %v1659, %v1660
          %v1662 = vmul.f32 %v1661, 0.015625
          %v1663 = vmul.f32 %v1640, %v1640
          %v1664 = vsub.f32 %v1662, %v1663
          %v1665 = vmax.f32 %v1664, 0.0
          %v1666 = vsub.f32 %v1619, %v1640
          %v1667 = vsub.f32 %v1620, %v1640
          %v1668 = vsub.f32 %v1621, %v1640
          %v1669 = vsub.f32 %v1622, %v1640
          %v1670 = vsub.f32 %v1623, %v1640
          %v1671 = vsub.f32 %v1624, %v1640
          %v1672 = vsub.f32 %v1625, %v1640
          %v1673 = vsub.f32 %v1626, %v1640
          %v1674 = vadd.f32 %v1665, 1e-05
          %v1675 = vrsqrt.pop %v1674
          %v1676 = vmul.f32 %v1675, %v1674
          %v1677 = vmul.f32 %v1676, %v1675
          %v1678 = vmul.f32 0.5, %v1677
          %v1679 = vsub.f32 1.5, %v1678
          %v1680 = vmul.f32 %v1675, %v1679
          %vm1681 = vweird.f32 %v1674
          %vm1682 = vweird.f32 %v1675
          %vm1683 = vmor %vm1681, %vm1682
          %v1684 = vsel %vm1683, %v1675, %v1680
          %v1685 = vmul.f32 %v1666, %v1684
          %v1686 = vmul.f32 %v1667, %v1684
          %v1687 = vmul.f32 %v1668, %v1684
          %v1688 = vmul.f32 %v1669, %v1684
          %v1689 = vmul.f32 %v1670, %v1684
          %v1690 = vmul.f32 %v1671, %v1684
          %v1691 = vmul.f32 %v1672, %v1684
          %v1692 = vmul.f32 %v1673, %v1684
          %1693 = vset.pattern.permute.xlu0 2
          %1694 = vperm.xlu0 %1693, %v281
          %v1695 = vpop.permute.xlu0 %1694
          %1697 = vset.pattern.permute.xlu0 2
          %1698 = vperm.xlu0 %1697, %v282
          %v1699 = vpop.permute.xlu0 %1698
          %1701 = vset.pattern.permute.xlu0 2
          %1702 = vperm.xlu0 %1701, %v283
          %v1703 = vpop.permute.xlu0 %1702
          %1705 = vset.pattern.permute.xlu0 2
          %1706 = vperm.xlu0 %1705, %v284
          %v1707 = vpop.permute.xlu0 %1706
          %1709 = vset.pattern.permute.xlu0 2
          %1710 = vperm.xlu0 %1709, %v285
          %v1711 = vpop.permute.xlu0 %1710
          %1713 = vset.pattern.permute.xlu0 2
          %1714 = vperm.xlu0 %1713, %v286
          %v1715 = vpop.permute.xlu0 %1714
          %1717 = vset.pattern.permute.xlu0 2
          %1718 = vperm.xlu0 %1717, %v287
          %v1719 = vpop.permute.xlu0 %1718
          %1721 = vset.pattern.permute.xlu0 2
          %1722 = vperm.xlu0 %1721, %v288
          %v1723 = vpop.permute.xlu0 %1722
          %v1725 = vmul.f32 %v1685, %v1695
          %v1726 = vmul.f32 %v1686, %v1699
          %v1727 = vmul.f32 %v1687, %v1703
          %v1728 = vmul.f32 %v1688, %v1707
          %v1729 = vmul.f32 %v1689, %v1711
          %v1730 = vmul.f32 %v1690, %v1715
          %v1731 = vmul.f32 %v1691, %v1719
          %v1732 = vmul.f32 %v1692, %v1723
          %1733 = vset.pattern.permute.xlu0 3
          %1734 = vperm.xlu0 %1733, %v281
          %v1735 = vpop.permute.xlu0 %1734
          %1737 = vset.pattern.permute.xlu0 3
          %1738 = vperm.xlu0 %1737, %v282
          %v1739 = vpop.permute.xlu0 %1738
          %1741 = vset.pattern.permute.xlu0 3
          %1742 = vperm.xlu0 %1741, %v283
          %v1743 = vpop.permute.xlu0 %1742
          %1745 = vset.pattern.permute.xlu0 3
          %1746 = vperm.xlu0 %1745, %v284
          %v1747 = vpop.permute.xlu0 %1746
          %1749 = vset.pattern.permute.xlu0 3
          %1750 = vperm.xlu0 %1749, %v285
          %v1751 = vpop.permute.xlu0 %1750
          %1753 = vset.pattern.permute.xlu0 3
          %1754 = vperm.xlu0 %1753, %v286
          %v1755 = vpop.permute.xlu0 %1754
          %1757 = vset.pattern.permute.xlu0 3
          %1758 = vperm.xlu0 %1757, %v287
          %v1759 = vpop.permute.xlu0 %1758
          %1761 = vset.pattern.permute.xlu0 3
          %1762 = vperm.xlu0 %1761, %v288
          %v1763 = vpop.permute.xlu0 %1762
          %v1765 = vadd.f32 %v1725, %v1735
          %v1766 = vadd.f32 %v1726, %v1739
          %v1767 = vadd.f32 %v1727, %v1743
          %v1768 = vadd.f32 %v1728, %v1747
          %v1769 = vadd.f32 %v1729, %v1751
          %v1770 = vadd.f32 %v1730, %v1755
          %v1771 = vadd.f32 %v1731, %v1759
          %v1772 = vadd.f32 %v1732, %v1763
          %v1773 = vsel %vm921, %v1765, 0.0
          %v1774 = vsel %vm921, %v1766, 0.0
          %v1775 = vsel %vm921, %v1767, 0.0
          %v1776 = vsel %vm921, %v1768, 0.0
          %v1777 = vsel %vm921, %v1769, 0.0
          %v1778 = vsel %vm921, %v1770, 0.0
          %v1779 = vsel %vm921, %v1771, 0.0
          %v1780 = vsel %vm921, %v1772, 0.0
          %v1781 = vpack.c.bf16 %v1773, %v1773
          %v1782 = vpack.c.bf16 %v1774, %v1774
          %v1783 = vpack.c.bf16 %v1775, %v1775
          %v1784 = vpack.c.bf16 %v1776, %v1776
          %v1785 = vpack.c.bf16 %v1777, %v1777
          %v1786 = vpack.c.bf16 %v1778, %v1778
          %v1787 = vpack.c.bf16 %v1779, %v1779
          %v1788 = vpack.c.bf16 %v1780, %v1780
          %1789 = vst [vmem:[%s259] sm:$0xf] %v1781
          %1790 = vst [vmem:[%s259 + $0x4] sm:$0xf] %v1782
          %1791 = vst [vmem:[%s259 + $0x8] sm:$0xf] %v1783
          %1792 = vst [vmem:[%s259 + $0xc] sm:$0xf] %v1784
          %1793 = vst [vmem:[%s259 + $0x10] sm:$0xf] %v1785
          %1794 = vst [vmem:[%s259 + $0x14] sm:$0xf] %v1786
          %1795 = vst [vmem:[%s259 + $0x18] sm:$0xf] %v1787
          %1796 = vst [vmem:[%s259 + $0x1c] sm:$0xf] %v1788
        $region56: #{tpu_custom_call.1} parent=35 // pred_fallthru
          _
        %s1797 = sand.u32 %s128, 1
        %s1798 = scalar_lea.sflag [#allocation9], %s1797
        %s1799 = sand.u32 %s128, 1
        %s1800 = smul.addr %s1799, 32
        %s1801 = scalar_lea.vmem [#allocation13], %s1800
        // Predicated region
        $region57: #{tpu_custom_call.1} parent=35 // pred_check
          %p1802 = pneg %p138
        $region58: #{tpu_custom_call.1} parent=35 // pred_check_branch
          %1804 = sbr.rel (%p1802) target = $region60
        $region59: #{tpu_custom_call.1} parent=35 // pred_region
          %1806 = vsyncadd %s1798, 0
          %s1807 = smul.addr %s31, 8
          %s1808 = smul.addr %s1807, 4
          %s1809 = scalar_lea.hbm %s5, %s1808
          %s1810 = sshll.u32 %s1801, 4
          %s1811 = int_to_ptr.vmem [resolvable:$true] %s1810
          %s1812 = sshll.u32 %s1809, 4
          %s1813 = int_to_ptr.hbm [resolvable:$true] %s1812
          %1818 = dma.vmem_to_hbm [thread:$0]  %s1811, 512, %s1813, %s1798, 64, 64, 4
        $region60: #{tpu_custom_call.1} parent=35 // pred_fallthru
          _
      $region36: #{tpu_custom_call.1} parent=5 // pred_fallthru
        _
      %p1819 = scmp.le.s32.totalorder 2, %s26
      // Predicated region
      $region61: #{tpu_custom_call.1} parent=5 // pred_check
        %p1820 = pneg %p1819
      $region62: #{tpu_custom_call.1} parent=5 // pred_check_branch
        %1822 = sbr.rel (%p1820) target = $region64
      $region63: #{tpu_custom_call.1} parent=5 // pred_region
        %s1823 = ssub.s32 %s26, 2
        // Predicated region
        $region65: #{tpu_custom_call.1} parent=63 // pred_check
          %p1824 = pneg %p144
        $region66: #{tpu_custom_call.1} parent=63 // pred_check_branch
          %1826 = sbr.rel (%p1824) target = $region68
        $region67: #{tpu_custom_call.1} parent=63 // pred_region
          %s1827 = sand.u32 %s129, 1
          %s1828 = scalar_lea.sflag [#allocation9], %s1827
          %s1829 = sand.u32 %s129, 1
          %s1830 = smul.addr %s1829, 32
          %s1831 = scalar_lea.vmem [#allocation13], %s1830
          %1833 = dma.done %s1828, 512
        $region68: #{tpu_custom_call.1} parent=63 // pred_fallthru
          _
      $region64: #{tpu_custom_call.1} parent=5 // pred_fallthru
        _
    $region6: #{tpu_custom_call.1} parent=1 // loop_footer
      %s30 = sadd.s32 1, %s26
    $region7: #{tpu_custom_call.1} parent=1 // loop_footer_branch
      %25 = sbr.rel target = $region3
    $region8: #{tpu_custom_call.1} parent=1 // loop_exit
      _
    %1834 = vsyncpa [#allocation8], 1
    %s1835 = scalar_lea.sflag [#allocation8], 1
    %1836 = vsyncpa %s1835, 1
    %1837 = vsyncpa [#allocation11], 1
    %1838 = vsyncpa [#allocation9], 1
    %s1839 = scalar_lea.sflag [#allocation9], 1
    %1840 = vsyncpa %s1839, 1

</llo_original>
